<compile_context>
chip_gen: v5e
topology: v5e:2x2
jax: 0.10.0
libtpu: 0.0.40
codegen_flags: <defaults>
</compile_context>

<pallas_src>
import functools
import math

import jax
import jax.numpy as jnp
from jax import lax
from jax.experimental import pallas as pl
from jax.experimental.pallas import tpu as pltpu


# Python float -> stays a literal in the jaxpr (no captured array constant).
_INV_SQRT2 = float(1.0 / math.sqrt(2.0))

_SUPPORTED = ("gelu", "relu", "softplus", "linear")

# Below this element count a fused XLA elementwise beats custom-call launch cost.
_SMALL_INPUT_ELEMS = 16384


def _apply_act(x, act_type):
    """Elementwise activation using only Python-scalar literals (kernel-safe)."""
    if act_type == "gelu":
        # Exact (erf-based) GELU, matching torch.nn.GELU() default.
        return 0.5 * x * (1.0 + lax.erf(x * _INV_SQRT2))
    if act_type == "relu":
        return jnp.maximum(x, 0.0)
    if act_type == "softplus":
        # Numerically stable softplus written with literals only.
        return jnp.maximum(x, 0.0) + jnp.log1p(jnp.exp(-jnp.abs(x)))
    return x  # 'linear'


def _act_kernel(x_ref, o_ref, *, act_type):
    # x_ref / o_ref: (TM, LANE) VMEM tiles, lane-dense -> unmasked full-width stores.
    x = x_ref[...].astype(jnp.float32)
    o_ref[...] = _apply_act(x, act_type).astype(o_ref.dtype)


def activate_function_forward(x, act_type="gelu", *, block_bytes=4 * 1024 * 1024):
    """Pallas implementation of Activate_Function.forward (default: GELU).

    x: any-shaped array (the PyTorch module uses NCHW); layout is preserved.
    """
    if act_type == "linear":
        return x  # nn.Identity()
    if act_type not in _SUPPORTED:
        # TODO(synk): prelu / rrelu / block_act not implemented (need per-channel
        # params / block_activation source).
        raise NotImplementedError(f"act_type={act_type!r} not supported")

    orig_shape = x.shape
    dtype = x.dtype
    total = x.size
    itemsize = jnp.dtype(dtype).itemsize

    # Small-input fast path: launch overhead would dominate the kernel time.
    if total <= _SMALL_INPUT_ELEMS:
        return _apply_act(x.astype(jnp.float32), act_type).astype(dtype)

    # Pick the widest lane (multiple of 128) that exactly divides the flat size
    # so the reshape is a free, contiguous view (no pad, no extra HBM passes).
    lane = None
    for cand in (2048, 1024, 512, 256, 128):
        if total % cand == 0:
            lane = cand
            break
    if lane is None:
        # TODO(synk): sizes not divisible by 128 fall back to XLA's fused
        # elementwise (1R+1W) instead of paying pad+slice extra HBM passes.
        return _apply_act(x.astype(jnp.float32), act_type).astype(dtype)

    rows = total // lane
    x2d = x.reshape(rows, lane)  # contiguous flatten, no transpose, no copy

    # Row-tile sized for ~block_bytes per stream; 16-row alignment matches both
    # f32 (8,128) and bf16 (16,128) packing.
    sub = 16
    tm = max(sub, (block_bytes // (lane * itemsize)) // sub * sub)
    tm = min(tm, ((rows + sub - 1) // sub) * sub)

    grid = (pl.cdiv(rows, tm),)  # ragged last block handled by Pallas masking

    cost = pl.CostEstimate(
        flops=8 * total,
        transcendentals=total if act_type in ("gelu", "softplus") else 0,
        bytes_accessed=2 * total * itemsize,
    )

    out2d = pl.pallas_call(
        functools.partial(_act_kernel, act_type=act_type),
        out_shape=jax.ShapeDtypeStruct((rows, lane), dtype),
        grid_spec=pltpu.PrefetchScalarGridSpec(
            num_scalar_prefetch=0,
            grid=grid,
            in_specs=[pl.BlockSpec((tm, lane), lambda i: (i, 0))],
            out_specs=pl.BlockSpec((tm, lane), lambda i: (i, 0)),
        ),
        compiler_params=pltpu.CompilerParams(
            dimension_semantics=("parallel",),
            vmem_limit_bytes=48 * 1024 * 1024,
        ),
        cost_estimate=cost,
    )(x2d)

    return out2d.reshape(orig_shape)


def _reference(x, act_type="gelu"):
    if act_type == "gelu":
        return jax.nn.gelu(x, approximate=False)
    if act_type == "relu":
        return jnp.maximum(x, 0.0)
    if act_type == "softplus":
        return jax.nn.softplus(x)
    return x


if __name__ == "__main__":
    key = jax.random.PRNGKey(0)
    k1, k2 = jax.random.split(key)

    # Shape consistent with the module's NCHW usage: batch=2, channels=4, 16x16.
    # (Small -> exercises the fast path, same semantics.)
    x_small = jax.random.normal(k1, (2, 4, 16, 16), dtype=jnp.float32)
    y_small = jax.block_until_ready(activate_function_forward(x_small, "gelu"))
    assert y_small.shape == x_small.shape
    assert jnp.allclose(y_small, _reference(x_small, "gelu"), atol=1e-5, rtol=1e-5)

    # Slightly larger NCHW tensor -> exercises the Pallas kernel path
    # (lane=2048, rows=24, ragged row-grid handled by Pallas).
    x_big = jax.random.normal(k2, (2, 8, 48, 64), dtype=jnp.float32)
    y_big = jax.block_until_ready(activate_function_forward(x_big, "gelu"))
    assert y_big.shape == x_big.shape
    assert jnp.allclose(y_big, _reference(x_big, "gelu"), atol=1e-5, rtol=1e-5)

    # Secondary elementwise branch through the same kernel.
    y_relu = jax.block_until_ready(activate_function_forward(x_big, "relu"))
    assert jnp.allclose(y_relu, _reference(x_big, "relu"), atol=1e-6, rtol=1e-6)

    print("KERNEL_OK")
</pallas_src>

<mosaic_0001>
module attributes {stable_mosaic.version = 11 : i64} {
  func.func @_act_kernel(%arg0: i32, %arg1: memref<32x2048xf32, #tpu.memory_space<vmem>>, %arg2: memref<32x2048xf32, #tpu.memory_space<vmem>>) attributes {dimension_semantics = [#tpu.dimension_semantics<parallel>], iteration_bounds = array<i64: 1>, scalar_prefetch = 0 : i64, scratch_operands = 0 : i64, tpu.core_type = #tpu.core_type<tc>, window_params = [{transform_indices = @transform_0, window_bounds = array<i64: 32, 2048>}, {transform_indices = @transform_1, window_bounds = array<i64: 32, 2048>}]} {
    %c0 = arith.constant 0 : index
    %c0_0 = arith.constant 0 : index
    %0 = vector.load %arg1[%c0, %c0_0] : memref<32x2048xf32, #tpu.memory_space<vmem>>, vector<32x2048xf32>
    %cst = arith.constant 5.000000e-01 : f32
    %1 = vector.broadcast %cst : f32 to vector<32x2048xf32>
    %2 = arith.mulf %1, %0 : vector<32x2048xf32>
    %cst_1 = arith.constant 0.707106769 : f32
    %3 = vector.broadcast %cst_1 : f32 to vector<32x2048xf32>
    %4 = arith.mulf %0, %3 : vector<32x2048xf32>
    %5 = math.erf %4 : vector<32x2048xf32>
    %cst_2 = arith.constant 1.000000e+00 : f32
    %6 = vector.broadcast %cst_2 : f32 to vector<32x2048xf32>
    %7 = arith.addf %6, %5 : vector<32x2048xf32>
    %8 = arith.mulf %2, %7 : vector<32x2048xf32>
    %c0_3 = arith.constant 0 : index
    %c0_4 = arith.constant 0 : index
    %9 = vector.load %arg2[%c0_3, %c0_4] : memref<32x2048xf32, #tpu.memory_space<vmem>>, vector<32x2048xf32>
    tpu.vector_store %arg2[%c0_3, %c0_4], %8 {strides = array<i32>} : memref<32x2048xf32, #tpu.memory_space<vmem>>, vector<32x2048xf32>,
    return
  }
  func.func @transform_0(%arg0: i32) -> (i32, i32) {
    %c0_i32 = arith.constant 0 : i32
    %c0_i32_0 = arith.constant 0 : i32
    return %arg0, %c0_i32 : i32, i32
  }
  func.func @transform_1(%arg0: i32) -> (i32, i32) {
    %c0_i32 = arith.constant 0 : i32
    %c0_i32_0 = arith.constant 0 : i32
    return %arg0, %c0_i32 : i32, i32
  }
}

</mosaic_0001>

<llo_original>
// kernel: tpu_custom_call.1
$region0: #{tpu_custom_call.1}
  #allocation0 [shape = 'u32[]', space=smem, size = 0x4, offset = 0x4, fixed_abs, tag = 'smem constant byte address 0x4 - core index']
  #allocation1 [shape = 'u32[72,128]{1,0:T(1,128)}', space=vmem, size = 0x9000, scoped, tag = 'internal scratch']
  %s0 = inlined_call_operand.hbm [shape: f32[24,2048], index: 0, kind: input, shape index: {}]
  %s1 = inlined_call_operand.hbm [shape: f32[24,2048], index: 1, kind: output, shape index: {}]
  %s2 = sld [smem:[#allocation0]]
  $region18: #{tpu_custom_call.1} parent=0
    _
  %s4 = ssub.s32 1, %s2
  %s5 = scalar_select 0, %s4, %s2
  $region1: #{tpu_custom_call.1} parent=0
    #allocation2 [shape = 'u8[262144]{0}', space=vmem, size = 0x40000, scoped, tag = 'input window, operand 0, single buffered']
    #allocation3 [shape = 's32[1]{0}', space=sflag, size = 0x4, scoped, tag = 'scoped memory for tpu_custom_call.1']
    #allocation4 [shape = 's32[1]{0}', space=sflag, size = 0x4, scoped, tag = 'scoped memory for tpu_custom_call.1']
    #allocation5 [shape = 'u8[262144]{0}', space=vmem, size = 0x40000, scoped, tag = 'output window, operand 0, single buffered']
    %6 = vsyncpa [#allocation3], 0
    %7 = vsyncpa [#allocation4], 0
    // Predicated region
    $region2: #{tpu_custom_call.1} parent=1 // pred_check
      _
    $region3: #{tpu_custom_call.1} parent=1 // pred_check_branch
      %9 = sbr.rel (0) target = $region5
    $region4: #{tpu_custom_call.1} parent=1 // pred_region
      %11 = vsyncadd [#allocation3], 2048
      %s12 = sshll.u32 %s0, 4
      %s13 = int_to_ptr.hbm [resolvable:$true] %s12
      %s14 = sshll.u32 [#allocation2], 4
      %s15 = int_to_ptr.vmem [resolvable:$true] %s14
      %20 = dma.hbm_to_vmem [thread:$0]  %s13, 6144, %s15, [#allocation3], 2048, 2048, 128
    $region5: #{tpu_custom_call.1} parent=1 // pred_fallthru
      _
    // Predicated region
    $region6: #{tpu_custom_call.1} parent=1 // pred_check
      _
    $region7: #{tpu_custom_call.1} parent=1 // pred_check_branch
      %22 = sbr.rel (0) target = $region9
    $region8: #{tpu_custom_call.1} parent=1 // pred_region
      %24 = dma.done [#allocation3], 8192
    $region9: #{tpu_custom_call.1} parent=1 // pred_fallthru
      _
    %v25 = vld [vmem:[#allocation2] sm:$0xff]
    %v26 = vld [vmem:[#allocation2 + $0x8] sm:$0xff]
    %v27 = vld [vmem:[#allocation2 + $0x10] sm:$0xff]
    %v28 = vld [vmem:[#allocation2 + $0x18] sm:$0xff]
    %v29 = vld [vmem:[#allocation2 + $0x20] sm:$0xff]
    %v30 = vld [vmem:[#allocation2 + $0x28] sm:$0xff]
    %v31 = vld [vmem:[#allocation2 + $0x30] sm:$0xff]
    %v32 = vld [vmem:[#allocation2 + $0x38] sm:$0xff]
    %v33 = vld [vmem:[#allocation2 + $0x40] sm:$0xff]
    %v34 = vld [vmem:[#allocation2 + $0x48] sm:$0xff]
    %v35 = vld [vmem:[#allocation2 + $0x50] sm:$0xff]
    %v36 = vld [vmem:[#allocation2 + $0x58] sm:$0xff]
    %v37 = vld [vmem:[#allocation2 + $0x60] sm:$0xff]
    %v38 = vld [vmem:[#allocation2 + $0x68] sm:$0xff]
    %v39 = vld [vmem:[#allocation2 + $0x70] sm:$0xff]
    %v40 = vld [vmem:[#allocation2 + $0x78] sm:$0xff]
    %v41 = vld [vmem:[#allocation2 + $0x80] sm:$0xff]
    %v42 = vld [vmem:[#allocation2 + $0x88] sm:$0xff]
    %v43 = vld [vmem:[#allocation2 + $0x90] sm:$0xff]
    %v44 = vld [vmem:[#allocation2 + $0x98] sm:$0xff]
    %v45 = vld [vmem:[#allocation2 + $0xa0] sm:$0xff]
    %v46 = vld [vmem:[#allocation2 + $0xa8] sm:$0xff]
    %v47 = vld [vmem:[#allocation2 + $0xb0] sm:$0xff]
    %v48 = vld [vmem:[#allocation2 + $0xb8] sm:$0xff]
    %v49 = vld [vmem:[#allocation2 + $0xc0] sm:$0xff]
    %v50 = vld [vmem:[#allocation2 + $0xc8] sm:$0xff]
    %v51 = vld [vmem:[#allocation2 + $0xd0] sm:$0xff]
    %v52 = vld [vmem:[#allocation2 + $0xd8] sm:$0xff]
    %v53 = vld [vmem:[#allocation2 + $0xe0] sm:$0xff]
    %v54 = vld [vmem:[#allocation2 + $0xe8] sm:$0xff]
    %v55 = vld [vmem:[#allocation2 + $0xf0] sm:$0xff]
    %v56 = vld [vmem:[#allocation2 + $0xf8] sm:$0xff]
    %v57 = vld [vmem:[#allocation2 + $0x100] sm:$0xff]
    %v58 = vld [vmem:[#allocation2 + $0x108] sm:$0xff]
    %v59 = vld [vmem:[#allocation2 + $0x110] sm:$0xff]
    %v60 = vld [vmem:[#allocation2 + $0x118] sm:$0xff]
    %v61 = vld [vmem:[#allocation2 + $0x120] sm:$0xff]
    %v62 = vld [vmem:[#allocation2 + $0x128] sm:$0xff]
    %v63 = vld [vmem:[#allocation2 + $0x130] sm:$0xff]
    %v64 = vld [vmem:[#allocation2 + $0x138] sm:$0xff]
    %v65 = vld [vmem:[#allocation2 + $0x140] sm:$0xff]
    %v66 = vld [vmem:[#allocation2 + $0x148] sm:$0xff]
    %v67 = vld [vmem:[#allocation2 + $0x150] sm:$0xff]
    %v68 = vld [vmem:[#allocation2 + $0x158] sm:$0xff]
    %v69 = vld [vmem:[#allocation2 + $0x160] sm:$0xff]
    %v70 = vld [vmem:[#allocation2 + $0x168] sm:$0xff]
    %v71 = vld [vmem:[#allocation2 + $0x170] sm:$0xff]
    %v72 = vld [vmem:[#allocation2 + $0x178] sm:$0xff]
    %v73 = vld [vmem:[#allocation2 + $0x180] sm:$0xff]
    %v74 = vld [vmem:[#allocation2 + $0x188] sm:$0xff]
    %v75 = vld [vmem:[#allocation2 + $0x190] sm:$0xff]
    %v76 = vld [vmem:[#allocation2 + $0x198] sm:$0xff]
    %v77 = vld [vmem:[#allocation2 + $0x1a0] sm:$0xff]
    %v78 = vld [vmem:[#allocation2 + $0x1a8] sm:$0xff]
    %v79 = vld [vmem:[#allocation2 + $0x1b0] sm:$0xff]
    %v80 = vld [vmem:[#allocation2 + $0x1b8] sm:$0xff]
    %v81 = vld [vmem:[#allocation2 + $0x1c0] sm:$0xff]
    %v82 = vld [vmem:[#allocation2 + $0x1c8] sm:$0xff]
    %v83 = vld [vmem:[#allocation2 + $0x1d0] sm:$0xff]
    %v84 = vld [vmem:[#allocation2 + $0x1d8] sm:$0xff]
    %v85 = vld [vmem:[#allocation2 + $0x1e0] sm:$0xff]
    %v86 = vld [vmem:[#allocation2 + $0x1e8] sm:$0xff]
    %v87 = vld [vmem:[#allocation2 + $0x1f0] sm:$0xff]
    %v88 = vld [vmem:[#allocation2 + $0x1f8] sm:$0xff]
    %v89 = vmul.f32 %v25, 0.5
    %v90 = vmul.f32 %v26, 0.5
    %v91 = vmul.f32 %v27, 0.5
    %v92 = vmul.f32 %v28, 0.5
    %v93 = vmul.f32 %v29, 0.5
    %v94 = vmul.f32 %v30, 0.5
    %v95 = vmul.f32 %v31, 0.5
    %v96 = vmul.f32 %v32, 0.5
    %v97 = vmul.f32 %v33, 0.5
    %v98 = vmul.f32 %v34, 0.5
    %v99 = vmul.f32 %v35, 0.5
    %v100 = vmul.f32 %v36, 0.5
    %v101 = vmul.f32 %v37, 0.5
    %v102 = vmul.f32 %v38, 0.5
    %v103 = vmul.f32 %v39, 0.5
    %v104 = vmul.f32 %v40, 0.5
    %v105 = vmul.f32 %v41, 0.5
    %v106 = vmul.f32 %v42, 0.5
    %v107 = vmul.f32 %v43, 0.5
    %v108 = vmul.f32 %v44, 0.5
    %v109 = vmul.f32 %v45, 0.5
    %v110 = vmul.f32 %v46, 0.5
    %v111 = vmul.f32 %v47, 0.5
    %v112 = vmul.f32 %v48, 0.5
    %v113 = vmul.f32 %v49, 0.5
    %v114 = vmul.f32 %v50, 0.5
    %v115 = vmul.f32 %v51, 0.5
    %v116 = vmul.f32 %v52, 0.5
    %v117 = vmul.f32 %v53, 0.5
    %v118 = vmul.f32 %v54, 0.5
    %v119 = vmul.f32 %v55, 0.5
    %v120 = vmul.f32 %v56, 0.5
    %v121 = vmul.f32 %v57, 0.5
    %v122 = vmul.f32 %v58, 0.5
    %v123 = vmul.f32 %v59, 0.5
    %v124 = vmul.f32 %v60, 0.5
    %v125 = vmul.f32 %v61, 0.5
    %v126 = vmul.f32 %v62, 0.5
    %v127 = vmul.f32 %v63, 0.5
    %v128 = vmul.f32 %v64, 0.5
    %v129 = vmul.f32 %v65, 0.5
    %v130 = vmul.f32 %v66, 0.5
    %v131 = vmul.f32 %v67, 0.5
    %v132 = vmul.f32 %v68, 0.5
    %v133 = vmul.f32 %v69, 0.5
    %v134 = vmul.f32 %v70, 0.5
    %v135 = vmul.f32 %v71, 0.5
    %v136 = vmul.f32 %v72, 0.5
    %v137 = vmul.f32 %v73, 0.5
    %v138 = vmul.f32 %v74, 0.5
    %v139 = vmul.f32 %v75, 0.5
    %v140 = vmul.f32 %v76, 0.5
    %v141 = vmul.f32 %v77, 0.5
    %v142 = vmul.f32 %v78, 0.5
    %v143 = vmul.f32 %v79, 0.5
    %v144 = vmul.f32 %v80, 0.5
    %v145 = vmul.f32 %v81, 0.5
    %v146 = vmul.f32 %v82, 0.5
    %v147 = vmul.f32 %v83, 0.5
    %v148 = vmul.f32 %v84, 0.5
    %v149 = vmul.f32 %v85, 0.5
    %v150 = vmul.f32 %v86, 0.5
    %v151 = vmul.f32 %v87, 0.5
    %v152 = vmul.f32 %v88, 0.5
    %v153 = vmul.f32 %v25, 0.70710677
    %v154 = vmul.f32 %v26, 0.70710677
    %v155 = vmul.f32 %v27, 0.70710677
    %v156 = vmul.f32 %v28, 0.70710677
    %v157 = vmul.f32 %v29, 0.70710677
    %v158 = vmul.f32 %v30, 0.70710677
    %v159 = vmul.f32 %v31, 0.70710677
    %v160 = vmul.f32 %v32, 0.70710677
    %v161 = vmul.f32 %v33, 0.70710677
    %v162 = vmul.f32 %v34, 0.70710677
    %v163 = vmul.f32 %v35, 0.70710677
    %v164 = vmul.f32 %v36, 0.70710677
    %v165 = vmul.f32 %v37, 0.70710677
    %v166 = vmul.f32 %v38, 0.70710677
    %v167 = vmul.f32 %v39, 0.70710677
    %v168 = vmul.f32 %v40, 0.70710677
    %v169 = vmul.f32 %v41, 0.70710677
    %v170 = vmul.f32 %v42, 0.70710677
    %v171 = vmul.f32 %v43, 0.70710677
    %v172 = vmul.f32 %v44, 0.70710677
    %v173 = vmul.f32 %v45, 0.70710677
    %v174 = vmul.f32 %v46, 0.70710677
    %v175 = vmul.f32 %v47, 0.70710677
    %v176 = vmul.f32 %v48, 0.70710677
    %v177 = vmul.f32 %v49, 0.70710677
    %v178 = vmul.f32 %v50, 0.70710677
    %v179 = vmul.f32 %v51, 0.70710677
    %v180 = vmul.f32 %v52, 0.70710677
    %v181 = vmul.f32 %v53, 0.70710677
    %v182 = vmul.f32 %v54, 0.70710677
    %v183 = vmul.f32 %v55, 0.70710677
    %v184 = vmul.f32 %v56, 0.70710677
    %v185 = vmul.f32 %v57, 0.70710677
    %v186 = vmul.f32 %v58, 0.70710677
    %v187 = vmul.f32 %v59, 0.70710677
    %v188 = vmul.f32 %v60, 0.70710677
    %v189 = vmul.f32 %v61, 0.70710677
    %v190 = vmul.f32 %v62, 0.70710677
    %v191 = vmul.f32 %v63, 0.70710677
    %v192 = vmul.f32 %v64, 0.70710677
    %v193 = vmul.f32 %v65, 0.70710677
    %v194 = vmul.f32 %v66, 0.70710677
    %v195 = vmul.f32 %v67, 0.70710677
    %v196 = vmul.f32 %v68, 0.70710677
    %v197 = vmul.f32 %v69, 0.70710677
    %v198 = vmul.f32 %v70, 0.70710677
    %v199 = vmul.f32 %v71, 0.70710677
    %v200 = vmul.f32 %v72, 0.70710677
    %v201 = vmul.f32 %v73, 0.70710677
    %v202 = vmul.f32 %v74, 0.70710677
    %v203 = vmul.f32 %v75, 0.70710677
    %v204 = vmul.f32 %v76, 0.70710677
    %v205 = vmul.f32 %v77, 0.70710677
    %v206 = vmul.f32 %v78, 0.70710677
    %v207 = vmul.f32 %v79, 0.70710677
    %v208 = vmul.f32 %v80, 0.70710677
    %v209 = vmul.f32 %v81, 0.70710677
    %v210 = vmul.f32 %v82, 0.70710677
    %v211 = vmul.f32 %v83, 0.70710677
    %v212 = vmul.f32 %v84, 0.70710677
    %v213 = vmul.f32 %v85, 0.70710677
    %v214 = vmul.f32 %v86, 0.70710677
    %v215 = vmul.f32 %v87, 0.70710677
    %v216 = vmul.f32 %v88, 0.70710677
    %v217 = vmul.f32 %v153, %v153
    %v218 = vmin.f32 16.0, %v217
    %v219 = vmul.f32 %v218, 2.1237322e-06
    %v220 = vadd.f32 %v219, 0.00028619796
    %v221 = vmul.f32 %v218, %v220
    %v222 = vadd.f32 %v221, 0.0036580483
    %v223 = vmul.f32 %v218, %v222
    %v224 = vadd.f32 %v223, 0.05243302
    %v225 = vmul.f32 %v218, %v224
    %v226 = vadd.f32 %v225, 0.18741608
    %v227 = vmul.f32 %v218, %v226
    %v228 = vadd.f32 %v227, 1.1283791
    %v229 = vmul.f32 %v153, %v228
    %v230 = vmul.f32 %v218, 3.8918573e-05
    %v231 = vadd.f32 %v230, 0.001143296
    %v232 = vmul.f32 %v218, %v231
    %v233 = vadd.f32 %v232, 0.014752088
    %v234 = vmul.f32 %v218, %v233
    %v235 = vadd.f32 %v234, 0.112945676
    %v236 = vmul.f32 %v218, %v235
    %v237 = vadd.f32 %v236, 0.4994258
    %v238 = vmul.f32 %v218, %v237
    %v239 = vadd.f32 %v238, 1.0
    %v240 = vrcp.pop %v239
    %v241 = vmul.f32 %v239, %v240
    %v242 = vsub.f32 1.0, %v241
    %v243 = vmul.f32 %v240, %v242
    %v244 = vadd.f32 %v240, %v243
    %vm245 = vweird.f32 %v239
    %vm246 = vweird.f32 %v240
    %vm247 = vmor %vm245, %vm246
    %v248 = vsel %vm247, %v240, %v244
    %v249 = vand.u32 2147483647, %v239
    %vm250 = vcmp.eq.f32.partialorder %v249, 8.507059e+37
    %v251 = vand.u32 %v239, 2147483648
    %v252 = vor.u32 1.1754944e-38, %v251
    %v253 = vsel %vm250, %v252, %v248
    %v254 = vmul.f32 %v229, %v253
    %v255 = vmin.f32 %v254, 1.0
    %v256 = vmax.f32 %v255, -1.0
    %v257 = vmul.f32 %v154, %v154
    %v258 = vmin.f32 16.0, %v257
    %v259 = vmul.f32 %v258, 2.1237322e-06
    %v260 = vadd.f32 %v259, 0.00028619796
    %v261 = vmul.f32 %v258, %v260
    %v262 = vadd.f32 %v261, 0.0036580483
    %v263 = vmul.f32 %v258, %v262
    %v264 = vadd.f32 %v263, 0.05243302
    %v265 = vmul.f32 %v258, %v264
    %v266 = vadd.f32 %v265, 0.18741608
    %v267 = vmul.f32 %v258, %v266
    %v268 = vadd.f32 %v267, 1.1283791
    %v269 = vmul.f32 %v154, %v268
    %v270 = vmul.f32 %v258, 3.8918573e-05
    %v271 = vadd.f32 %v270, 0.001143296
    %v272 = vmul.f32 %v258, %v271
    %v273 = vadd.f32 %v272, 0.014752088
    %v274 = vmul.f32 %v258, %v273
    %v275 = vadd.f32 %v274, 0.112945676
    %v276 = vmul.f32 %v258, %v275
    %v277 = vadd.f32 %v276, 0.4994258
    %v278 = vmul.f32 %v258, %v277
    %v279 = vadd.f32 %v278, 1.0
    %v280 = vrcp.pop %v279
    %v281 = vmul.f32 %v279, %v280
    %v282 = vsub.f32 1.0, %v281
    %v283 = vmul.f32 %v280, %v282
    %v284 = vadd.f32 %v280, %v283
    %vm285 = vweird.f32 %v279
    %vm286 = vweird.f32 %v280
    %vm287 = vmor %vm285, %vm286
    %v288 = vsel %vm287, %v280, %v284
    %v289 = vand.u32 2147483647, %v279
    %vm290 = vcmp.eq.f32.partialorder %v289, 8.507059e+37
    %v291 = vand.u32 %v279, 2147483648
    %v292 = vor.u32 1.1754944e-38, %v291
    %v293 = vsel %vm290, %v292, %v288
    %v294 = vmul.f32 %v269, %v293
    %v295 = vmin.f32 %v294, 1.0
    %v296 = vmax.f32 %v295, -1.0
    %v297 = vmul.f32 %v155, %v155
    %v298 = vmin.f32 16.0, %v297
    %v299 = vmul.f32 %v298, 2.1237322e-06
    %v300 = vadd.f32 %v299, 0.00028619796
    %v301 = vmul.f32 %v298, %v300
    %v302 = vadd.f32 %v301, 0.0036580483
    %v303 = vmul.f32 %v298, %v302
    %v304 = vadd.f32 %v303, 0.05243302
    %v305 = vmul.f32 %v298, %v304
    %v306 = vadd.f32 %v305, 0.18741608
    %v307 = vmul.f32 %v298, %v306
    %v308 = vadd.f32 %v307, 1.1283791
    %v309 = vmul.f32 %v155, %v308
    %v310 = vmul.f32 %v298, 3.8918573e-05
    %v311 = vadd.f32 %v310, 0.001143296
    %v312 = vmul.f32 %v298, %v311
    %v313 = vadd.f32 %v312, 0.014752088
    %v314 = vmul.f32 %v298, %v313
    %v315 = vadd.f32 %v314, 0.112945676
    %v316 = vmul.f32 %v298, %v315
    %v317 = vadd.f32 %v316, 0.4994258
    %v318 = vmul.f32 %v298, %v317
    %v319 = vadd.f32 %v318, 1.0
    %v320 = vrcp.pop %v319
    %v321 = vmul.f32 %v319, %v320
    %v322 = vsub.f32 1.0, %v321
    %v323 = vmul.f32 %v320, %v322
    %v324 = vadd.f32 %v320, %v323
    %vm325 = vweird.f32 %v319
    %vm326 = vweird.f32 %v320
    %vm327 = vmor %vm325, %vm326
    %v328 = vsel %vm327, %v320, %v324
    %v329 = vand.u32 2147483647, %v319
    %vm330 = vcmp.eq.f32.partialorder %v329, 8.507059e+37
    %v331 = vand.u32 %v319, 2147483648
    %v332 = vor.u32 1.1754944e-38, %v331
    %v333 = vsel %vm330, %v332, %v328
    %v334 = vmul.f32 %v309, %v333
    %v335 = vmin.f32 %v334, 1.0
    %v336 = vmax.f32 %v335, -1.0
    %v337 = vmul.f32 %v156, %v156
    %v338 = vmin.f32 16.0, %v337
    %v339 = vmul.f32 %v338, 2.1237322e-06
    %v340 = vadd.f32 %v339, 0.00028619796
    %v341 = vmul.f32 %v338, %v340
    %v342 = vadd.f32 %v341, 0.0036580483
    %v343 = vmul.f32 %v338, %v342
    %v344 = vadd.f32 %v343, 0.05243302
    %v345 = vmul.f32 %v338, %v344
    %v346 = vadd.f32 %v345, 0.18741608
    %v347 = vmul.f32 %v338, %v346
    %v348 = vadd.f32 %v347, 1.1283791
    %v349 = vmul.f32 %v156, %v348
    %v350 = vmul.f32 %v338, 3.8918573e-05
    %v351 = vadd.f32 %v350, 0.001143296
    %v352 = vmul.f32 %v338, %v351
    %v353 = vadd.f32 %v352, 0.014752088
    %v354 = vmul.f32 %v338, %v353
    %v355 = vadd.f32 %v354, 0.112945676
    %v356 = vmul.f32 %v338, %v355
    %v357 = vadd.f32 %v356, 0.4994258
    %v358 = vmul.f32 %v338, %v357
    %v359 = vadd.f32 %v358, 1.0
    %v360 = vrcp.pop %v359
    %v361 = vmul.f32 %v359, %v360
    %v362 = vsub.f32 1.0, %v361
    %v363 = vmul.f32 %v360, %v362
    %v364 = vadd.f32 %v360, %v363
    %vm365 = vweird.f32 %v359
    %vm366 = vweird.f32 %v360
    %vm367 = vmor %vm365, %vm366
    %v368 = vsel %vm367, %v360, %v364
    %v369 = vand.u32 2147483647, %v359
    %vm370 = vcmp.eq.f32.partialorder %v369, 8.507059e+37
    %v371 = vand.u32 %v359, 2147483648
    %v372 = vor.u32 1.1754944e-38, %v371
    %v373 = vsel %vm370, %v372, %v368
    %v374 = vmul.f32 %v349, %v373
    %v375 = vmin.f32 %v374, 1.0
    %v376 = vmax.f32 %v375, -1.0
    %v377 = vmul.f32 %v157, %v157
    %v378 = vmin.f32 16.0, %v377
    %v379 = vmul.f32 %v378, 2.1237322e-06
    %v380 = vadd.f32 %v379, 0.00028619796
    %v381 = vmul.f32 %v378, %v380
    %v382 = vadd.f32 %v381, 0.0036580483
    %v383 = vmul.f32 %v378, %v382
    %v384 = vadd.f32 %v383, 0.05243302
    %v385 = vmul.f32 %v378, %v384
    %v386 = vadd.f32 %v385, 0.18741608
    %v387 = vmul.f32 %v378, %v386
    %v388 = vadd.f32 %v387, 1.1283791
    %v389 = vmul.f32 %v157, %v388
    %v390 = vmul.f32 %v378, 3.8918573e-05
    %v391 = vadd.f32 %v390, 0.001143296
    %v392 = vmul.f32 %v378, %v391
    %v393 = vadd.f32 %v392, 0.014752088
    %v394 = vmul.f32 %v378, %v393
    %v395 = vadd.f32 %v394, 0.112945676
    %v396 = vmul.f32 %v378, %v395
    %v397 = vadd.f32 %v396, 0.4994258
    %v398 = vmul.f32 %v378, %v397
    %v399 = vadd.f32 %v398, 1.0
    %v400 = vrcp.pop %v399
    %v401 = vmul.f32 %v399, %v400
    %v402 = vsub.f32 1.0, %v401
    %v403 = vmul.f32 %v400, %v402
    %v404 = vadd.f32 %v400, %v403
    %vm405 = vweird.f32 %v399
    %vm406 = vweird.f32 %v400
    %vm407 = vmor %vm405, %vm406
    %v408 = vsel %vm407, %v400, %v404
    %v409 = vand.u32 2147483647, %v399
    %vm410 = vcmp.eq.f32.partialorder %v409, 8.507059e+37
    %v411 = vand.u32 %v399, 2147483648
    %v412 = vor.u32 1.1754944e-38, %v411
    %v413 = vsel %vm410, %v412, %v408
    %v414 = vmul.f32 %v389, %v413
    %v415 = vmin.f32 %v414, 1.0
    %v416 = vmax.f32 %v415, -1.0
    %v417 = vmul.f32 %v158, %v158
    %v418 = vmin.f32 16.0, %v417
    %v419 = vmul.f32 %v418, 2.1237322e-06
    %v420 = vadd.f32 %v419, 0.00028619796
    %v421 = vmul.f32 %v418, %v420
    %v422 = vadd.f32 %v421, 0.0036580483
    %v423 = vmul.f32 %v418, %v422
    %v424 = vadd.f32 %v423, 0.05243302
    %v425 = vmul.f32 %v418, %v424
    %v426 = vadd.f32 %v425, 0.18741608
    %v427 = vmul.f32 %v418, %v426
    %v428 = vadd.f32 %v427, 1.1283791
    %v429 = vmul.f32 %v158, %v428
    %v430 = vmul.f32 %v418, 3.8918573e-05
    %v431 = vadd.f32 %v430, 0.001143296
    %v432 = vmul.f32 %v418, %v431
    %v433 = vadd.f32 %v432, 0.014752088
    %v434 = vmul.f32 %v418, %v433
    %v435 = vadd.f32 %v434, 0.112945676
    %v436 = vmul.f32 %v418, %v435
    %v437 = vadd.f32 %v436, 0.4994258
    %v438 = vmul.f32 %v418, %v437
    %v439 = vadd.f32 %v438, 1.0
    %v440 = vrcp.pop %v439
    %v441 = vmul.f32 %v439, %v440
    %v442 = vsub.f32 1.0, %v441
    %v443 = vmul.f32 %v440, %v442
    %v444 = vadd.f32 %v440, %v443
    %vm445 = vweird.f32 %v439
    %vm446 = vweird.f32 %v440
    %vm447 = vmor %vm445, %vm446
    %v448 = vsel %vm447, %v440, %v444
    %v449 = vand.u32 2147483647, %v439
    %vm450 = vcmp.eq.f32.partialorder %v449, 8.507059e+37
    %v451 = vand.u32 %v439, 2147483648
    %v452 = vor.u32 1.1754944e-38, %v451
    %v453 = vsel %vm450, %v452, %v448
    %v454 = vmul.f32 %v429, %v453
    %v455 = vmin.f32 %v454, 1.0
    %v456 = vmax.f32 %v455, -1.0
    %v457 = vmul.f32 %v159, %v159
    %v458 = vmin.f32 16.0, %v457
    %v459 = vmul.f32 %v458, 2.1237322e-06
    %v460 = vadd.f32 %v459, 0.00028619796
    %v461 = vmul.f32 %v458, %v460
    %v462 = vadd.f32 %v461, 0.0036580483
    %v463 = vmul.f32 %v458, %v462
    %v464 = vadd.f32 %v463, 0.05243302
    %v465 = vmul.f32 %v458, %v464
    %v466 = vadd.f32 %v465, 0.18741608
    %v467 = vmul.f32 %v458, %v466
    %v468 = vadd.f32 %v467, 1.1283791
    %v469 = vmul.f32 %v159, %v468
    %v470 = vmul.f32 %v458, 3.8918573e-05
    %v471 = vadd.f32 %v470, 0.001143296
    %v472 = vmul.f32 %v458, %v471
    %v473 = vadd.f32 %v472, 0.014752088
    %v474 = vmul.f32 %v458, %v473
    %v475 = vadd.f32 %v474, 0.112945676
    %v476 = vmul.f32 %v458, %v475
    %v477 = vadd.f32 %v476, 0.4994258
    %v478 = vmul.f32 %v458, %v477
    %v479 = vadd.f32 %v478, 1.0
    %v480 = vrcp.pop %v479
    %v481 = vmul.f32 %v479, %v480
    %v482 = vsub.f32 1.0, %v481
    %v483 = vmul.f32 %v480, %v482
    %v484 = vadd.f32 %v480, %v483
    %vm485 = vweird.f32 %v479
    %vm486 = vweird.f32 %v480
    %vm487 = vmor %vm485, %vm486
    %v488 = vsel %vm487, %v480, %v484
    %v489 = vand.u32 2147483647, %v479
    %vm490 = vcmp.eq.f32.partialorder %v489, 8.507059e+37
    %v491 = vand.u32 %v479, 2147483648
    %v492 = vor.u32 1.1754944e-38, %v491
    %v493 = vsel %vm490, %v492, %v488
    %v494 = vmul.f32 %v469, %v493
    %v495 = vmin.f32 %v494, 1.0
    %v496 = vmax.f32 %v495, -1.0
    %v497 = vmul.f32 %v160, %v160
    %v498 = vmin.f32 16.0, %v497
    %v499 = vmul.f32 %v498, 2.1237322e-06
    %v500 = vadd.f32 %v499, 0.00028619796
    %v501 = vmul.f32 %v498, %v500
    %v502 = vadd.f32 %v501, 0.0036580483
    %v503 = vmul.f32 %v498, %v502
    %v504 = vadd.f32 %v503, 0.05243302
    %v505 = vmul.f32 %v498, %v504
    %v506 = vadd.f32 %v505, 0.18741608
    %v507 = vmul.f32 %v498, %v506
    %v508 = vadd.f32 %v507, 1.1283791
    %v509 = vmul.f32 %v160, %v508
    %v510 = vmul.f32 %v498, 3.8918573e-05
    %v511 = vadd.f32 %v510, 0.001143296
    %v512 = vmul.f32 %v498, %v511
    %v513 = vadd.f32 %v512, 0.014752088
    %v514 = vmul.f32 %v498, %v513
    %v515 = vadd.f32 %v514, 0.112945676
    %v516 = vmul.f32 %v498, %v515
    %v517 = vadd.f32 %v516, 0.4994258
    %v518 = vmul.f32 %v498, %v517
    %v519 = vadd.f32 %v518, 1.0
    %v520 = vrcp.pop %v519
    %v521 = vmul.f32 %v519, %v520
    %v522 = vsub.f32 1.0, %v521
    %v523 = vmul.f32 %v520, %v522
    %v524 = vadd.f32 %v520, %v523
    %vm525 = vweird.f32 %v519
    %vm526 = vweird.f32 %v520
    %vm527 = vmor %vm525, %vm526
    %v528 = vsel %vm527, %v520, %v524
    %v529 = vand.u32 2147483647, %v519
    %vm530 = vcmp.eq.f32.partialorder %v529, 8.507059e+37
    %v531 = vand.u32 %v519, 2147483648
    %v532 = vor.u32 1.1754944e-38, %v531
    %v533 = vsel %vm530, %v532, %v528
    %v534 = vmul.f32 %v509, %v533
    %v535 = vmin.f32 %v534, 1.0
    %v536 = vmax.f32 %v535, -1.0
    %v537 = vmul.f32 %v161, %v161
    %v538 = vmin.f32 16.0, %v537
    %v539 = vmul.f32 %v538, 2.1237322e-06
    %v540 = vadd.f32 %v539, 0.00028619796
    %v541 = vmul.f32 %v538, %v540
    %v542 = vadd.f32 %v541, 0.0036580483
    %v543 = vmul.f32 %v538, %v542
    %v544 = vadd.f32 %v543, 0.05243302
    %v545 = vmul.f32 %v538, %v544
    %v546 = vadd.f32 %v545, 0.18741608
    %v547 = vmul.f32 %v538, %v546
    %v548 = vadd.f32 %v547, 1.1283791
    %v549 = vmul.f32 %v161, %v548
    %v550 = vmul.f32 %v538, 3.8918573e-05
    %v551 = vadd.f32 %v550, 0.001143296
    %v552 = vmul.f32 %v538, %v551
    %v553 = vadd.f32 %v552, 0.014752088
    %v554 = vmul.f32 %v538, %v553
    %v555 = vadd.f32 %v554, 0.112945676
    %v556 = vmul.f32 %v538, %v555
    %v557 = vadd.f32 %v556, 0.4994258
    %v558 = vmul.f32 %v538, %v557
    %v559 = vadd.f32 %v558, 1.0
    %v560 = vrcp.pop %v559
    %v561 = vmul.f32 %v559, %v560
    %v562 = vsub.f32 1.0, %v561
    %v563 = vmul.f32 %v560, %v562
    %v564 = vadd.f32 %v560, %v563
    %vm565 = vweird.f32 %v559
    %vm566 = vweird.f32 %v560
    %vm567 = vmor %vm565, %vm566
    %v568 = vsel %vm567, %v560, %v564
    %v569 = vand.u32 2147483647, %v559
    %vm570 = vcmp.eq.f32.partialorder %v569, 8.507059e+37
    %v571 = vand.u32 %v559, 2147483648
    %v572 = vor.u32 1.1754944e-38, %v571
    %v573 = vsel %vm570, %v572, %v568
    %v574 = vmul.f32 %v549, %v573
    %v575 = vmin.f32 %v574, 1.0
    %v576 = vmax.f32 %v575, -1.0
    %v577 = vmul.f32 %v162, %v162
    %v578 = vmin.f32 16.0, %v577
    %v579 = vmul.f32 %v578, 2.1237322e-06
    %v580 = vadd.f32 %v579, 0.00028619796
    %v581 = vmul.f32 %v578, %v580
    %v582 = vadd.f32 %v581, 0.0036580483
    %v583 = vmul.f32 %v578, %v582
    %v584 = vadd.f32 %v583, 0.05243302
    %v585 = vmul.f32 %v578, %v584
    %v586 = vadd.f32 %v585, 0.18741608
    %v587 = vmul.f32 %v578, %v586
    %v588 = vadd.f32 %v587, 1.1283791
    %v589 = vmul.f32 %v162, %v588
    %v590 = vmul.f32 %v578, 3.8918573e-05
    %v591 = vadd.f32 %v590, 0.001143296
    %v592 = vmul.f32 %v578, %v591
    %v593 = vadd.f32 %v592, 0.014752088
    %v594 = vmul.f32 %v578, %v593
    %v595 = vadd.f32 %v594, 0.112945676
    %v596 = vmul.f32 %v578, %v595
    %v597 = vadd.f32 %v596, 0.4994258
    %v598 = vmul.f32 %v578, %v597
    %v599 = vadd.f32 %v598, 1.0
    %v600 = vrcp.pop %v599
    %v601 = vmul.f32 %v599, %v600
    %v602 = vsub.f32 1.0, %v601
    %v603 = vmul.f32 %v600, %v602
    %v604 = vadd.f32 %v600, %v603
    %vm605 = vweird.f32 %v599
    %vm606 = vweird.f32 %v600
    %vm607 = vmor %vm605, %vm606
    %v608 = vsel %vm607, %v600, %v604
    %v609 = vand.u32 2147483647, %v599
    %vm610 = vcmp.eq.f32.partialorder %v609, 8.507059e+37
    %v611 = vand.u32 %v599, 2147483648
    %v612 = vor.u32 1.1754944e-38, %v611
    %v613 = vsel %vm610, %v612, %v608
    %v614 = vmul.f32 %v589, %v613
    %v615 = vmin.f32 %v614, 1.0
    %v616 = vmax.f32 %v615, -1.0
    %v617 = vmul.f32 %v163, %v163
    %v618 = vmin.f32 16.0, %v617
    %v619 = vmul.f32 %v618, 2.1237322e-06
    %v620 = vadd.f32 %v619, 0.00028619796
    %v621 = vmul.f32 %v618, %v620
    %v622 = vadd.f32 %v621, 0.0036580483
    %v623 = vmul.f32 %v618, %v622
    %v624 = vadd.f32 %v623, 0.05243302
    %v625 = vmul.f32 %v618, %v624
    %v626 = vadd.f32 %v625, 0.18741608
    %v627 = vmul.f32 %v618, %v626
    %v628 = vadd.f32 %v627, 1.1283791
    %v629 = vmul.f32 %v163, %v628
    %v630 = vmul.f32 %v618, 3.8918573e-05
    %v631 = vadd.f32 %v630, 0.001143296
    %v632 = vmul.f32 %v618, %v631
    %v633 = vadd.f32 %v632, 0.014752088
    %v634 = vmul.f32 %v618, %v633
    %v635 = vadd.f32 %v634, 0.112945676
    %v636 = vmul.f32 %v618, %v635
    %v637 = vadd.f32 %v636, 0.4994258
    %v638 = vmul.f32 %v618, %v637
    %v639 = vadd.f32 %v638, 1.0
    %v640 = vrcp.pop %v639
    %v641 = vmul.f32 %v639, %v640
    %v642 = vsub.f32 1.0, %v641
    %v643 = vmul.f32 %v640, %v642
    %v644 = vadd.f32 %v640, %v643
    %vm645 = vweird.f32 %v639
    %vm646 = vweird.f32 %v640
    %vm647 = vmor %vm645, %vm646
    %v648 = vsel %vm647, %v640, %v644
    %v649 = vand.u32 2147483647, %v639
    %vm650 = vcmp.eq.f32.partialorder %v649, 8.507059e+37
    %v651 = vand.u32 %v639, 2147483648
    %v652 = vor.u32 1.1754944e-38, %v651
    %v653 = vsel %vm650, %v652, %v648
    %v654 = vmul.f32 %v629, %v653
    %v655 = vmin.f32 %v654, 1.0
    %v656 = vmax.f32 %v655, -1.0
    %v657 = vmul.f32 %v164, %v164
    %v658 = vmin.f32 16.0, %v657
    %v659 = vmul.f32 %v658, 2.1237322e-06
    %v660 = vadd.f32 %v659, 0.00028619796
    %v661 = vmul.f32 %v658, %v660
    %v662 = vadd.f32 %v661, 0.0036580483
    %v663 = vmul.f32 %v658, %v662
    %v664 = vadd.f32 %v663, 0.05243302
    %v665 = vmul.f32 %v658, %v664
    %v666 = vadd.f32 %v665, 0.18741608
    %v667 = vmul.f32 %v658, %v666
    %v668 = vadd.f32 %v667, 1.1283791
    %v669 = vmul.f32 %v164, %v668
    %v670 = vmul.f32 %v658, 3.8918573e-05
    %v671 = vadd.f32 %v670, 0.001143296
    %v672 = vmul.f32 %v658, %v671
    %v673 = vadd.f32 %v672, 0.014752088
    %v674 = vmul.f32 %v658, %v673
    %v675 = vadd.f32 %v674, 0.112945676
    %v676 = vmul.f32 %v658, %v675
    %v677 = vadd.f32 %v676, 0.4994258
    %v678 = vmul.f32 %v658, %v677
    %v679 = vadd.f32 %v678, 1.0
    %v680 = vrcp.pop %v679
    %v681 = vmul.f32 %v679, %v680
    %v682 = vsub.f32 1.0, %v681
    %v683 = vmul.f32 %v680, %v682
    %v684 = vadd.f32 %v680, %v683
    %vm685 = vweird.f32 %v679
    %vm686 = vweird.f32 %v680
    %vm687 = vmor %vm685, %vm686
    %v688 = vsel %vm687, %v680, %v684
    %v689 = vand.u32 2147483647, %v679
    %vm690 = vcmp.eq.f32.partialorder %v689, 8.507059e+37
    %v691 = vand.u32 %v679, 2147483648
    %v692 = vor.u32 1.1754944e-38, %v691
    %v693 = vsel %vm690, %v692, %v688
    %v694 = vmul.f32 %v669, %v693
    %v695 = vmin.f32 %v694, 1.0
    %v696 = vmax.f32 %v695, -1.0
    %v697 = vmul.f32 %v165, %v165
    %v698 = vmin.f32 16.0, %v697
    %v699 = vmul.f32 %v698, 2.1237322e-06
    %v700 = vadd.f32 %v699, 0.00028619796
    %v701 = vmul.f32 %v698, %v700
    %v702 = vadd.f32 %v701, 0.0036580483
    %v703 = vmul.f32 %v698, %v702
    %v704 = vadd.f32 %v703, 0.05243302
    %v705 = vmul.f32 %v698, %v704
    %v706 = vadd.f32 %v705, 0.18741608
    %v707 = vmul.f32 %v698, %v706
    %v708 = vadd.f32 %v707, 1.1283791
    %v709 = vmul.f32 %v165, %v708
    %v710 = vmul.f32 %v698, 3.8918573e-05
    %v711 = vadd.f32 %v710, 0.001143296
    %v712 = vmul.f32 %v698, %v711
    %v713 = vadd.f32 %v712, 0.014752088
    %v714 = vmul.f32 %v698, %v713
    %v715 = vadd.f32 %v714, 0.112945676
    %v716 = vmul.f32 %v698, %v715
    %v717 = vadd.f32 %v716, 0.4994258
    %v718 = vmul.f32 %v698, %v717
    %v719 = vadd.f32 %v718, 1.0
    %v720 = vrcp.pop %v719
    %v721 = vmul.f32 %v719, %v720
    %v722 = vsub.f32 1.0, %v721
    %v723 = vmul.f32 %v720, %v722
    %v724 = vadd.f32 %v720, %v723
    %vm725 = vweird.f32 %v719
    %vm726 = vweird.f32 %v720
    %vm727 = vmor %vm725, %vm726
    %v728 = vsel %vm727, %v720, %v724
    %v729 = vand.u32 2147483647, %v719
    %vm730 = vcmp.eq.f32.partialorder %v729, 8.507059e+37
    %v731 = vand.u32 %v719, 2147483648
    %v732 = vor.u32 1.1754944e-38, %v731
    %v733 = vsel %vm730, %v732, %v728
    %v734 = vmul.f32 %v709, %v733
    %v735 = vmin.f32 %v734, 1.0
    %v736 = vmax.f32 %v735, -1.0
    %v737 = vmul.f32 %v166, %v166
    %v738 = vmin.f32 16.0, %v737
    %v739 = vmul.f32 %v738, 2.1237322e-06
    %v740 = vadd.f32 %v739, 0.00028619796
    %v741 = vmul.f32 %v738, %v740
    %v742 = vadd.f32 %v741, 0.0036580483
    %v743 = vmul.f32 %v738, %v742
    %v744 = vadd.f32 %v743, 0.05243302
    %v745 = vmul.f32 %v738, %v744
    %v746 = vadd.f32 %v745, 0.18741608
    %v747 = vmul.f32 %v738, %v746
    %v748 = vadd.f32 %v747, 1.1283791
    %v749 = vmul.f32 %v166, %v748
    %v750 = vmul.f32 %v738, 3.8918573e-05
    %v751 = vadd.f32 %v750, 0.001143296
    %v752 = vmul.f32 %v738, %v751
    %v753 = vadd.f32 %v752, 0.014752088
    %v754 = vmul.f32 %v738, %v753
    %v755 = vadd.f32 %v754, 0.112945676
    %v756 = vmul.f32 %v738, %v755
    %v757 = vadd.f32 %v756, 0.4994258
    %v758 = vmul.f32 %v738, %v757
    %v759 = vadd.f32 %v758, 1.0
    %v760 = vrcp.pop %v759
    %v761 = vmul.f32 %v759, %v760
    %v762 = vsub.f32 1.0, %v761
    %v763 = vmul.f32 %v760, %v762
    %v764 = vadd.f32 %v760, %v763
    %vm765 = vweird.f32 %v759
    %vm766 = vweird.f32 %v760
    %vm767 = vmor %vm765, %vm766
    %v768 = vsel %vm767, %v760, %v764
    %v769 = vand.u32 2147483647, %v759
    %vm770 = vcmp.eq.f32.partialorder %v769, 8.507059e+37
    %v771 = vand.u32 %v759, 2147483648
    %v772 = vor.u32 1.1754944e-38, %v771
    %v773 = vsel %vm770, %v772, %v768
    %v774 = vmul.f32 %v749, %v773
    %v775 = vmin.f32 %v774, 1.0
    %v776 = vmax.f32 %v775, -1.0
    %v777 = vmul.f32 %v167, %v167
    %v778 = vmin.f32 16.0, %v777
    %v779 = vmul.f32 %v778, 2.1237322e-06
    %v780 = vadd.f32 %v779, 0.00028619796
    %v781 = vmul.f32 %v778, %v780
    %v782 = vadd.f32 %v781, 0.0036580483
    %v783 = vmul.f32 %v778, %v782
    %v784 = vadd.f32 %v783, 0.05243302
    %v785 = vmul.f32 %v778, %v784
    %v786 = vadd.f32 %v785, 0.18741608
    %v787 = vmul.f32 %v778, %v786
    %v788 = vadd.f32 %v787, 1.1283791
    %v789 = vmul.f32 %v167, %v788
    %v790 = vmul.f32 %v778, 3.8918573e-05
    %v791 = vadd.f32 %v790, 0.001143296
    %v792 = vmul.f32 %v778, %v791
    %v793 = vadd.f32 %v792, 0.014752088
    %v794 = vmul.f32 %v778, %v793
    %v795 = vadd.f32 %v794, 0.112945676
    %v796 = vmul.f32 %v778, %v795
    %v797 = vadd.f32 %v796, 0.4994258
    %v798 = vmul.f32 %v778, %v797
    %v799 = vadd.f32 %v798, 1.0
    %v800 = vrcp.pop %v799
    %v801 = vmul.f32 %v799, %v800
    %v802 = vsub.f32 1.0, %v801
    %v803 = vmul.f32 %v800, %v802
    %v804 = vadd.f32 %v800, %v803
    %vm805 = vweird.f32 %v799
    %vm806 = vweird.f32 %v800
    %vm807 = vmor %vm805, %vm806
    %v808 = vsel %vm807, %v800, %v804
    %v809 = vand.u32 2147483647, %v799
    %vm810 = vcmp.eq.f32.partialorder %v809, 8.507059e+37
    %v811 = vand.u32 %v799, 2147483648
    %v812 = vor.u32 1.1754944e-38, %v811
    %v813 = vsel %vm810, %v812, %v808
    %v814 = vmul.f32 %v789, %v813
    %v815 = vmin.f32 %v814, 1.0
    %v816 = vmax.f32 %v815, -1.0
    %v817 = vmul.f32 %v168, %v168
    %v818 = vmin.f32 16.0, %v817
    %v819 = vmul.f32 %v818, 2.1237322e-06
    %v820 = vadd.f32 %v819, 0.00028619796
    %v821 = vmul.f32 %v818, %v820
    %v822 = vadd.f32 %v821, 0.0036580483
    %v823 = vmul.f32 %v818, %v822
    %v824 = vadd.f32 %v823, 0.05243302
    %v825 = vmul.f32 %v818, %v824
    %v826 = vadd.f32 %v825, 0.18741608
    %v827 = vmul.f32 %v818, %v826
    %v828 = vadd.f32 %v827, 1.1283791
    %v829 = vmul.f32 %v168, %v828
    %v830 = vmul.f32 %v818, 3.8918573e-05
    %v831 = vadd.f32 %v830, 0.001143296
    %v832 = vmul.f32 %v818, %v831
    %v833 = vadd.f32 %v832, 0.014752088
    %v834 = vmul.f32 %v818, %v833
    %v835 = vadd.f32 %v834, 0.112945676
    %v836 = vmul.f32 %v818, %v835
    %v837 = vadd.f32 %v836, 0.4994258
    %v838 = vmul.f32 %v818, %v837
    %v839 = vadd.f32 %v838, 1.0
    %v840 = vrcp.pop %v839
    %v841 = vmul.f32 %v839, %v840
    %v842 = vsub.f32 1.0, %v841
    %v843 = vmul.f32 %v840, %v842
    %v844 = vadd.f32 %v840, %v843
    %vm845 = vweird.f32 %v839
    %vm846 = vweird.f32 %v840
    %vm847 = vmor %vm845, %vm846
    %v848 = vsel %vm847, %v840, %v844
    %v849 = vand.u32 2147483647, %v839
    %vm850 = vcmp.eq.f32.partialorder %v849, 8.507059e+37
    %v851 = vand.u32 %v839, 2147483648
    %v852 = vor.u32 1.1754944e-38, %v851
    %v853 = vsel %vm850, %v852, %v848
    %v854 = vmul.f32 %v829, %v853
    %v855 = vmin.f32 %v854, 1.0
    %v856 = vmax.f32 %v855, -1.0
    %v857 = vmul.f32 %v169, %v169
    %v858 = vmin.f32 16.0, %v857
    %v859 = vmul.f32 %v858, 2.1237322e-06
    %v860 = vadd.f32 %v859, 0.00028619796
    %v861 = vmul.f32 %v858, %v860
    %v862 = vadd.f32 %v861, 0.0036580483
    %v863 = vmul.f32 %v858, %v862
    %v864 = vadd.f32 %v863, 0.05243302
    %v865 = vmul.f32 %v858, %v864
    %v866 = vadd.f32 %v865, 0.18741608
    %v867 = vmul.f32 %v858, %v866
    %v868 = vadd.f32 %v867, 1.1283791
    %v869 = vmul.f32 %v169, %v868
    %v870 = vmul.f32 %v858, 3.8918573e-05
    %v871 = vadd.f32 %v870, 0.001143296
    %v872 = vmul.f32 %v858, %v871
    %v873 = vadd.f32 %v872, 0.014752088
    %v874 = vmul.f32 %v858, %v873
    %v875 = vadd.f32 %v874, 0.112945676
    %v876 = vmul.f32 %v858, %v875
    %v877 = vadd.f32 %v876, 0.4994258
    %v878 = vmul.f32 %v858, %v877
    %v879 = vadd.f32 %v878, 1.0
    %v880 = vrcp.pop %v879
    %v881 = vmul.f32 %v879, %v880
    %v882 = vsub.f32 1.0, %v881
    %v883 = vmul.f32 %v880, %v882
    %v884 = vadd.f32 %v880, %v883
    %vm885 = vweird.f32 %v879
    %vm886 = vweird.f32 %v880
    %vm887 = vmor %vm885, %vm886
    %v888 = vsel %vm887, %v880, %v884
    %v889 = vand.u32 2147483647, %v879
    %vm890 = vcmp.eq.f32.partialorder %v889, 8.507059e+37
    %v891 = vand.u32 %v879, 2147483648
    %v892 = vor.u32 1.1754944e-38, %v891
    %v893 = vsel %vm890, %v892, %v888
    %v894 = vmul.f32 %v869, %v893
    %v895 = vmin.f32 %v894, 1.0
    %v896 = vmax.f32 %v895, -1.0
    %v897 = vmul.f32 %v170, %v170
    %v898 = vmin.f32 16.0, %v897
    %v899 = vmul.f32 %v898, 2.1237322e-06
    %v900 = vadd.f32 %v899, 0.00028619796
    %v901 = vmul.f32 %v898, %v900
    %v902 = vadd.f32 %v901, 0.0036580483
    %v903 = vmul.f32 %v898, %v902
    %v904 = vadd.f32 %v903, 0.05243302
    %v905 = vmul.f32 %v898, %v904
    %v906 = vadd.f32 %v905, 0.18741608
    %v907 = vmul.f32 %v898, %v906
    %v908 = vadd.f32 %v907, 1.1283791
    %v909 = vmul.f32 %v170, %v908
    %v910 = vmul.f32 %v898, 3.8918573e-05
    %v911 = vadd.f32 %v910, 0.001143296
    %v912 = vmul.f32 %v898, %v911
    %v913 = vadd.f32 %v912, 0.014752088
    %v914 = vmul.f32 %v898, %v913
    %v915 = vadd.f32 %v914, 0.112945676
    %v916 = vmul.f32 %v898, %v915
    %v917 = vadd.f32 %v916, 0.4994258
    %v918 = vmul.f32 %v898, %v917
    %v919 = vadd.f32 %v918, 1.0
    %v920 = vrcp.pop %v919
    %v921 = vmul.f32 %v919, %v920
    %v922 = vsub.f32 1.0, %v921
    %v923 = vmul.f32 %v920, %v922
    %v924 = vadd.f32 %v920, %v923
    %vm925 = vweird.f32 %v919
    %vm926 = vweird.f32 %v920
    %vm927 = vmor %vm925, %vm926
    %v928 = vsel %vm927, %v920, %v924
    %v929 = vand.u32 2147483647, %v919
    %vm930 = vcmp.eq.f32.partialorder %v929, 8.507059e+37
    %v931 = vand.u32 %v919, 2147483648
    %v932 = vor.u32 1.1754944e-38, %v931
    %v933 = vsel %vm930, %v932, %v928
    %v934 = vmul.f32 %v909, %v933
    %v935 = vmin.f32 %v934, 1.0
    %v936 = vmax.f32 %v935, -1.0
    %v937 = vmul.f32 %v171, %v171
    %v938 = vmin.f32 16.0, %v937
    %v939 = vmul.f32 %v938, 2.1237322e-06
    %v940 = vadd.f32 %v939, 0.00028619796
    %v941 = vmul.f32 %v938, %v940
    %v942 = vadd.f32 %v941, 0.0036580483
    %v943 = vmul.f32 %v938, %v942
    %v944 = vadd.f32 %v943, 0.05243302
    %v945 = vmul.f32 %v938, %v944
    %v946 = vadd.f32 %v945, 0.18741608
    %v947 = vmul.f32 %v938, %v946
    %v948 = vadd.f32 %v947, 1.1283791
    %v949 = vmul.f32 %v171, %v948
    %v950 = vmul.f32 %v938, 3.8918573e-05
    %v951 = vadd.f32 %v950, 0.001143296
    %v952 = vmul.f32 %v938, %v951
    %v953 = vadd.f32 %v952, 0.014752088
    %v954 = vmul.f32 %v938, %v953
    %v955 = vadd.f32 %v954, 0.112945676
    %v956 = vmul.f32 %v938, %v955
    %v957 = vadd.f32 %v956, 0.4994258
    %v958 = vmul.f32 %v938, %v957
    %v959 = vadd.f32 %v958, 1.0
    %v960 = vrcp.pop %v959
    %v961 = vmul.f32 %v959, %v960
    %v962 = vsub.f32 1.0, %v961
    %v963 = vmul.f32 %v960, %v962
    %v964 = vadd.f32 %v960, %v963
    %vm965 = vweird.f32 %v959
    %vm966 = vweird.f32 %v960
    %vm967 = vmor %vm965, %vm966
    %v968 = vsel %vm967, %v960, %v964
    %v969 = vand.u32 2147483647, %v959
    %vm970 = vcmp.eq.f32.partialorder %v969, 8.507059e+37
    %v971 = vand.u32 %v959, 2147483648
    %v972 = vor.u32 1.1754944e-38, %v971
    %v973 = vsel %vm970, %v972, %v968
    %v974 = vmul.f32 %v949, %v973
    %v975 = vmin.f32 %v974, 1.0
    %v976 = vmax.f32 %v975, -1.0
    %v977 = vmul.f32 %v172, %v172
    %v978 = vmin.f32 16.0, %v977
    %v979 = vmul.f32 %v978, 2.1237322e-06
    %v980 = vadd.f32 %v979, 0.00028619796
    %v981 = vmul.f32 %v978, %v980
    %v982 = vadd.f32 %v981, 0.0036580483
    %v983 = vmul.f32 %v978, %v982
    %v984 = vadd.f32 %v983, 0.05243302
    %v985 = vmul.f32 %v978, %v984
    %v986 = vadd.f32 %v985, 0.18741608
    %v987 = vmul.f32 %v978, %v986
    %v988 = vadd.f32 %v987, 1.1283791
    %v989 = vmul.f32 %v172, %v988
    %v990 = vmul.f32 %v978, 3.8918573e-05
    %v991 = vadd.f32 %v990, 0.001143296
    %v992 = vmul.f32 %v978, %v991
    %v993 = vadd.f32 %v992, 0.014752088
    %v994 = vmul.f32 %v978, %v993
    %v995 = vadd.f32 %v994, 0.112945676
    %v996 = vmul.f32 %v978, %v995
    %v997 = vadd.f32 %v996, 0.4994258
    %v998 = vmul.f32 %v978, %v997
    %v999 = vadd.f32 %v998, 1.0
    %v1000 = vrcp.pop %v999
    %v1001 = vmul.f32 %v999, %v1000
    %v1002 = vsub.f32 1.0, %v1001
    %v1003 = vmul.f32 %v1000, %v1002
    %v1004 = vadd.f32 %v1000, %v1003
    %vm1005 = vweird.f32 %v999
    %vm1006 = vweird.f32 %v1000
    %vm1007 = vmor %vm1005, %vm1006
    %v1008 = vsel %vm1007, %v1000, %v1004
    %v1009 = vand.u32 2147483647, %v999
    %vm1010 = vcmp.eq.f32.partialorder %v1009, 8.507059e+37
    %v1011 = vand.u32 %v999, 2147483648
    %v1012 = vor.u32 1.1754944e-38, %v1011
    %v1013 = vsel %vm1010, %v1012, %v1008
    %v1014 = vmul.f32 %v989, %v1013
    %v1015 = vmin.f32 %v1014, 1.0
    %v1016 = vmax.f32 %v1015, -1.0
    %v1017 = vmul.f32 %v173, %v173
    %v1018 = vmin.f32 16.0, %v1017
    %v1019 = vmul.f32 %v1018, 2.1237322e-06
    %v1020 = vadd.f32 %v1019, 0.00028619796
    %v1021 = vmul.f32 %v1018, %v1020
    %v1022 = vadd.f32 %v1021, 0.0036580483
    %v1023 = vmul.f32 %v1018, %v1022
    %v1024 = vadd.f32 %v1023, 0.05243302
    %v1025 = vmul.f32 %v1018, %v1024
    %v1026 = vadd.f32 %v1025, 0.18741608
    %v1027 = vmul.f32 %v1018, %v1026
    %v1028 = vadd.f32 %v1027, 1.1283791
    %v1029 = vmul.f32 %v173, %v1028
    %v1030 = vmul.f32 %v1018, 3.8918573e-05
    %v1031 = vadd.f32 %v1030, 0.001143296
    %v1032 = vmul.f32 %v1018, %v1031
    %v1033 = vadd.f32 %v1032, 0.014752088
    %v1034 = vmul.f32 %v1018, %v1033
    %v1035 = vadd.f32 %v1034, 0.112945676
    %v1036 = vmul.f32 %v1018, %v1035
    %v1037 = vadd.f32 %v1036, 0.4994258
    %v1038 = vmul.f32 %v1018, %v1037
    %v1039 = vadd.f32 %v1038, 1.0
    %v1040 = vrcp.pop %v1039
    %v1041 = vmul.f32 %v1039, %v1040
    %v1042 = vsub.f32 1.0, %v1041
    %v1043 = vmul.f32 %v1040, %v1042
    %v1044 = vadd.f32 %v1040, %v1043
    %vm1045 = vweird.f32 %v1039
    %vm1046 = vweird.f32 %v1040
    %vm1047 = vmor %vm1045, %vm1046
    %v1048 = vsel %vm1047, %v1040, %v1044
    %v1049 = vand.u32 2147483647, %v1039
    %vm1050 = vcmp.eq.f32.partialorder %v1049, 8.507059e+37
    %v1051 = vand.u32 %v1039, 2147483648
    %v1052 = vor.u32 1.1754944e-38, %v1051
    %v1053 = vsel %vm1050, %v1052, %v1048
    %v1054 = vmul.f32 %v1029, %v1053
    %v1055 = vmin.f32 %v1054, 1.0
    %v1056 = vmax.f32 %v1055, -1.0
    %v1057 = vmul.f32 %v174, %v174
    %v1058 = vmin.f32 16.0, %v1057
    %v1059 = vmul.f32 %v1058, 2.1237322e-06
    %v1060 = vadd.f32 %v1059, 0.00028619796
    %v1061 = vmul.f32 %v1058, %v1060
    %v1062 = vadd.f32 %v1061, 0.0036580483
    %v1063 = vmul.f32 %v1058, %v1062
    %v1064 = vadd.f32 %v1063, 0.05243302
    %v1065 = vmul.f32 %v1058, %v1064
    %v1066 = vadd.f32 %v1065, 0.18741608
    %v1067 = vmul.f32 %v1058, %v1066
    %v1068 = vadd.f32 %v1067, 1.1283791
    %v1069 = vmul.f32 %v174, %v1068
    %v1070 = vmul.f32 %v1058, 3.8918573e-05
    %v1071 = vadd.f32 %v1070, 0.001143296
    %v1072 = vmul.f32 %v1058, %v1071
    %v1073 = vadd.f32 %v1072, 0.014752088
    %v1074 = vmul.f32 %v1058, %v1073
    %v1075 = vadd.f32 %v1074, 0.112945676
    %v1076 = vmul.f32 %v1058, %v1075
    %v1077 = vadd.f32 %v1076, 0.4994258
    %v1078 = vmul.f32 %v1058, %v1077
    %v1079 = vadd.f32 %v1078, 1.0
    %v1080 = vrcp.pop %v1079
    %v1081 = vmul.f32 %v1079, %v1080
    %v1082 = vsub.f32 1.0, %v1081
    %v1083 = vmul.f32 %v1080, %v1082
    %v1084 = vadd.f32 %v1080, %v1083
    %vm1085 = vweird.f32 %v1079
    %vm1086 = vweird.f32 %v1080
    %vm1087 = vmor %vm1085, %vm1086
    %v1088 = vsel %vm1087, %v1080, %v1084
    %v1089 = vand.u32 2147483647, %v1079
    %vm1090 = vcmp.eq.f32.partialorder %v1089, 8.507059e+37
    %v1091 = vand.u32 %v1079, 2147483648
    %v1092 = vor.u32 1.1754944e-38, %v1091
    %v1093 = vsel %vm1090, %v1092, %v1088
    %v1094 = vmul.f32 %v1069, %v1093
    %v1095 = vmin.f32 %v1094, 1.0
    %v1096 = vmax.f32 %v1095, -1.0
    %v1097 = vmul.f32 %v175, %v175
    %v1098 = vmin.f32 16.0, %v1097
    %v1099 = vmul.f32 %v1098, 2.1237322e-06
    %v1100 = vadd.f32 %v1099, 0.00028619796
    %v1101 = vmul.f32 %v1098, %v1100
    %v1102 = vadd.f32 %v1101, 0.0036580483
    %v1103 = vmul.f32 %v1098, %v1102
    %v1104 = vadd.f32 %v1103, 0.05243302
    %v1105 = vmul.f32 %v1098, %v1104
    %v1106 = vadd.f32 %v1105, 0.18741608
    %v1107 = vmul.f32 %v1098, %v1106
    %v1108 = vadd.f32 %v1107, 1.1283791
    %v1109 = vmul.f32 %v175, %v1108
    %v1110 = vmul.f32 %v1098, 3.8918573e-05
    %v1111 = vadd.f32 %v1110, 0.001143296
    %v1112 = vmul.f32 %v1098, %v1111
    %v1113 = vadd.f32 %v1112, 0.014752088
    %v1114 = vmul.f32 %v1098, %v1113
    %v1115 = vadd.f32 %v1114, 0.112945676
    %v1116 = vmul.f32 %v1098, %v1115
    %v1117 = vadd.f32 %v1116, 0.4994258
    %v1118 = vmul.f32 %v1098, %v1117
    %v1119 = vadd.f32 %v1118, 1.0
    %v1120 = vrcp.pop %v1119
    %v1121 = vmul.f32 %v1119, %v1120
    %v1122 = vsub.f32 1.0, %v1121
    %v1123 = vmul.f32 %v1120, %v1122
    %v1124 = vadd.f32 %v1120, %v1123
    %vm1125 = vweird.f32 %v1119
    %vm1126 = vweird.f32 %v1120
    %vm1127 = vmor %vm1125, %vm1126
    %v1128 = vsel %vm1127, %v1120, %v1124
    %v1129 = vand.u32 2147483647, %v1119
    %vm1130 = vcmp.eq.f32.partialorder %v1129, 8.507059e+37
    %v1131 = vand.u32 %v1119, 2147483648
    %v1132 = vor.u32 1.1754944e-38, %v1131
    %v1133 = vsel %vm1130, %v1132, %v1128
    %v1134 = vmul.f32 %v1109, %v1133
    %v1135 = vmin.f32 %v1134, 1.0
    %v1136 = vmax.f32 %v1135, -1.0
    %v1137 = vmul.f32 %v176, %v176
    %v1138 = vmin.f32 16.0, %v1137
    %v1139 = vmul.f32 %v1138, 2.1237322e-06
    %v1140 = vadd.f32 %v1139, 0.00028619796
    %v1141 = vmul.f32 %v1138, %v1140
    %v1142 = vadd.f32 %v1141, 0.0036580483
    %v1143 = vmul.f32 %v1138, %v1142
    %v1144 = vadd.f32 %v1143, 0.05243302
    %v1145 = vmul.f32 %v1138, %v1144
    %v1146 = vadd.f32 %v1145, 0.18741608
    %v1147 = vmul.f32 %v1138, %v1146
    %v1148 = vadd.f32 %v1147, 1.1283791
    %v1149 = vmul.f32 %v176, %v1148
    %v1150 = vmul.f32 %v1138, 3.8918573e-05
    %v1151 = vadd.f32 %v1150, 0.001143296
    %v1152 = vmul.f32 %v1138, %v1151
    %v1153 = vadd.f32 %v1152, 0.014752088
    %v1154 = vmul.f32 %v1138, %v1153
    %v1155 = vadd.f32 %v1154, 0.112945676
    %v1156 = vmul.f32 %v1138, %v1155
    %v1157 = vadd.f32 %v1156, 0.4994258
    %v1158 = vmul.f32 %v1138, %v1157
    %v1159 = vadd.f32 %v1158, 1.0
    %v1160 = vrcp.pop %v1159
    %v1161 = vmul.f32 %v1159, %v1160
    %v1162 = vsub.f32 1.0, %v1161
    %v1163 = vmul.f32 %v1160, %v1162
    %v1164 = vadd.f32 %v1160, %v1163
    %vm1165 = vweird.f32 %v1159
    %vm1166 = vweird.f32 %v1160
    %vm1167 = vmor %vm1165, %vm1166
    %v1168 = vsel %vm1167, %v1160, %v1164
    %v1169 = vand.u32 2147483647, %v1159
    %vm1170 = vcmp.eq.f32.partialorder %v1169, 8.507059e+37
    %v1171 = vand.u32 %v1159, 2147483648
    %v1172 = vor.u32 1.1754944e-38, %v1171
    %v1173 = vsel %vm1170, %v1172, %v1168
    %v1174 = vmul.f32 %v1149, %v1173
    %v1175 = vmin.f32 %v1174, 1.0
    %v1176 = vmax.f32 %v1175, -1.0
    %v1177 = vmul.f32 %v177, %v177
    %v1178 = vmin.f32 16.0, %v1177
    %v1179 = vmul.f32 %v1178, 2.1237322e-06
    %v1180 = vadd.f32 %v1179, 0.00028619796
    %v1181 = vmul.f32 %v1178, %v1180
    %v1182 = vadd.f32 %v1181, 0.0036580483
    %v1183 = vmul.f32 %v1178, %v1182
    %v1184 = vadd.f32 %v1183, 0.05243302
    %v1185 = vmul.f32 %v1178, %v1184
    %v1186 = vadd.f32 %v1185, 0.18741608
    %v1187 = vmul.f32 %v1178, %v1186
    %v1188 = vadd.f32 %v1187, 1.1283791
    %v1189 = vmul.f32 %v177, %v1188
    %v1190 = vmul.f32 %v1178, 3.8918573e-05
    %v1191 = vadd.f32 %v1190, 0.001143296
    %v1192 = vmul.f32 %v1178, %v1191
    %v1193 = vadd.f32 %v1192, 0.014752088
    %v1194 = vmul.f32 %v1178, %v1193
    %v1195 = vadd.f32 %v1194, 0.112945676
    %v1196 = vmul.f32 %v1178, %v1195
    %v1197 = vadd.f32 %v1196, 0.4994258
    %v1198 = vmul.f32 %v1178, %v1197
    %v1199 = vadd.f32 %v1198, 1.0
    %v1200 = vrcp.pop %v1199
    %v1201 = vmul.f32 %v1199, %v1200
    %v1202 = vsub.f32 1.0, %v1201
    %v1203 = vmul.f32 %v1200, %v1202
    %v1204 = vadd.f32 %v1200, %v1203
    %vm1205 = vweird.f32 %v1199
    %vm1206 = vweird.f32 %v1200
    %vm1207 = vmor %vm1205, %vm1206
    %v1208 = vsel %vm1207, %v1200, %v1204
    %v1209 = vand.u32 2147483647, %v1199
    %vm1210 = vcmp.eq.f32.partialorder %v1209, 8.507059e+37
    %v1211 = vand.u32 %v1199, 2147483648
    %v1212 = vor.u32 1.1754944e-38, %v1211
    %v1213 = vsel %vm1210, %v1212, %v1208
    %v1214 = vmul.f32 %v1189, %v1213
    %v1215 = vmin.f32 %v1214, 1.0
    %v1216 = vmax.f32 %v1215, -1.0
    %v1217 = vmul.f32 %v178, %v178
    %v1218 = vmin.f32 16.0, %v1217
    %v1219 = vmul.f32 %v1218, 2.1237322e-06
    %v1220 = vadd.f32 %v1219, 0.00028619796
    %v1221 = vmul.f32 %v1218, %v1220
    %v1222 = vadd.f32 %v1221, 0.0036580483
    %v1223 = vmul.f32 %v1218, %v1222
    %v1224 = vadd.f32 %v1223, 0.05243302
    %v1225 = vmul.f32 %v1218, %v1224
    %v1226 = vadd.f32 %v1225, 0.18741608
    %v1227 = vmul.f32 %v1218, %v1226
    %v1228 = vadd.f32 %v1227, 1.1283791
    %v1229 = vmul.f32 %v178, %v1228
    %v1230 = vmul.f32 %v1218, 3.8918573e-05
    %v1231 = vadd.f32 %v1230, 0.001143296
    %v1232 = vmul.f32 %v1218, %v1231
    %v1233 = vadd.f32 %v1232, 0.014752088
    %v1234 = vmul.f32 %v1218, %v1233
    %v1235 = vadd.f32 %v1234, 0.112945676
    %v1236 = vmul.f32 %v1218, %v1235
    %v1237 = vadd.f32 %v1236, 0.4994258
    %v1238 = vmul.f32 %v1218, %v1237
    %v1239 = vadd.f32 %v1238, 1.0
    %v1240 = vrcp.pop %v1239
    %v1241 = vmul.f32 %v1239, %v1240
    %v1242 = vsub.f32 1.0, %v1241
    %v1243 = vmul.f32 %v1240, %v1242
    %v1244 = vadd.f32 %v1240, %v1243
    %vm1245 = vweird.f32 %v1239
    %vm1246 = vweird.f32 %v1240
    %vm1247 = vmor %vm1245, %vm1246
    %v1248 = vsel %vm1247, %v1240, %v1244
    %v1249 = vand.u32 2147483647, %v1239
    %vm1250 = vcmp.eq.f32.partialorder %v1249, 8.507059e+37
    %v1251 = vand.u32 %v1239, 2147483648
    %v1252 = vor.u32 1.1754944e-38, %v1251
    %v1253 = vsel %vm1250, %v1252, %v1248
    %v1254 = vmul.f32 %v1229, %v1253
    %v1255 = vmin.f32 %v1254, 1.0
    %v1256 = vmax.f32 %v1255, -1.0
    %v1257 = vmul.f32 %v179, %v179
    %v1258 = vmin.f32 16.0, %v1257
    %v1259 = vmul.f32 %v1258, 2.1237322e-06
    %v1260 = vadd.f32 %v1259, 0.00028619796
    %v1261 = vmul.f32 %v1258, %v1260
    %v1262 = vadd.f32 %v1261, 0.0036580483
    %v1263 = vmul.f32 %v1258, %v1262
    %v1264 = vadd.f32 %v1263, 0.05243302
    %v1265 = vmul.f32 %v1258, %v1264
    %v1266 = vadd.f32 %v1265, 0.18741608
    %v1267 = vmul.f32 %v1258, %v1266
    %v1268 = vadd.f32 %v1267, 1.1283791
    %v1269 = vmul.f32 %v179, %v1268
    %v1270 = vmul.f32 %v1258, 3.8918573e-05
    %v1271 = vadd.f32 %v1270, 0.001143296
    %v1272 = vmul.f32 %v1258, %v1271
    %v1273 = vadd.f32 %v1272, 0.014752088
    %v1274 = vmul.f32 %v1258, %v1273
    %v1275 = vadd.f32 %v1274, 0.112945676
    %v1276 = vmul.f32 %v1258, %v1275
    %v1277 = vadd.f32 %v1276, 0.4994258
    %v1278 = vmul.f32 %v1258, %v1277
    %v1279 = vadd.f32 %v1278, 1.0
    %v1280 = vrcp.pop %v1279
    %v1281 = vmul.f32 %v1279, %v1280
    %v1282 = vsub.f32 1.0, %v1281
    %v1283 = vmul.f32 %v1280, %v1282
    %v1284 = vadd.f32 %v1280, %v1283
    %vm1285 = vweird.f32 %v1279
    %vm1286 = vweird.f32 %v1280
    %vm1287 = vmor %vm1285, %vm1286
    %v1288 = vsel %vm1287, %v1280, %v1284
    %v1289 = vand.u32 2147483647, %v1279
    %vm1290 = vcmp.eq.f32.partialorder %v1289, 8.507059e+37
    %v1291 = vand.u32 %v1279, 2147483648
    %v1292 = vor.u32 1.1754944e-38, %v1291
    %v1293 = vsel %vm1290, %v1292, %v1288
    %v1294 = vmul.f32 %v1269, %v1293
    %v1295 = vmin.f32 %v1294, 1.0
    %v1296 = vmax.f32 %v1295, -1.0
    %v1297 = vmul.f32 %v180, %v180
    %v1298 = vmin.f32 16.0, %v1297
    %v1299 = vmul.f32 %v1298, 2.1237322e-06
    %v1300 = vadd.f32 %v1299, 0.00028619796
    %v1301 = vmul.f32 %v1298, %v1300
    %v1302 = vadd.f32 %v1301, 0.0036580483
    %v1303 = vmul.f32 %v1298, %v1302
    %v1304 = vadd.f32 %v1303, 0.05243302
    %v1305 = vmul.f32 %v1298, %v1304
    %v1306 = vadd.f32 %v1305, 0.18741608
    %v1307 = vmul.f32 %v1298, %v1306
    %v1308 = vadd.f32 %v1307, 1.1283791
    %v1309 = vmul.f32 %v180, %v1308
    %v1310 = vmul.f32 %v1298, 3.8918573e-05
    %v1311 = vadd.f32 %v1310, 0.001143296
    %v1312 = vmul.f32 %v1298, %v1311
    %v1313 = vadd.f32 %v1312, 0.014752088
    %v1314 = vmul.f32 %v1298, %v1313
    %v1315 = vadd.f32 %v1314, 0.112945676
    %v1316 = vmul.f32 %v1298, %v1315
    %v1317 = vadd.f32 %v1316, 0.4994258
    %v1318 = vmul.f32 %v1298, %v1317
    %v1319 = vadd.f32 %v1318, 1.0
    %v1320 = vrcp.pop %v1319
    %v1321 = vmul.f32 %v1319, %v1320
    %v1322 = vsub.f32 1.0, %v1321
    %v1323 = vmul.f32 %v1320, %v1322
    %v1324 = vadd.f32 %v1320, %v1323
    %vm1325 = vweird.f32 %v1319
    %vm1326 = vweird.f32 %v1320
    %vm1327 = vmor %vm1325, %vm1326
    %v1328 = vsel %vm1327, %v1320, %v1324
    %v1329 = vand.u32 2147483647, %v1319
    %vm1330 = vcmp.eq.f32.partialorder %v1329, 8.507059e+37
    %v1331 = vand.u32 %v1319, 2147483648
    %v1332 = vor.u32 1.1754944e-38, %v1331
    %v1333 = vsel %vm1330, %v1332, %v1328
    %v1334 = vmul.f32 %v1309, %v1333
    %v1335 = vmin.f32 %v1334, 1.0
    %v1336 = vmax.f32 %v1335, -1.0
    %v1337 = vmul.f32 %v181, %v181
    %v1338 = vmin.f32 16.0, %v1337
    %v1339 = vmul.f32 %v1338, 2.1237322e-06
    %v1340 = vadd.f32 %v1339, 0.00028619796
    %v1341 = vmul.f32 %v1338, %v1340
    %v1342 = vadd.f32 %v1341, 0.0036580483
    %v1343 = vmul.f32 %v1338, %v1342
    %v1344 = vadd.f32 %v1343, 0.05243302
    %v1345 = vmul.f32 %v1338, %v1344
    %v1346 = vadd.f32 %v1345, 0.18741608
    %v1347 = vmul.f32 %v1338, %v1346
    %v1348 = vadd.f32 %v1347, 1.1283791
    %v1349 = vmul.f32 %v181, %v1348
    %v1350 = vmul.f32 %v1338, 3.8918573e-05
    %v1351 = vadd.f32 %v1350, 0.001143296
    %v1352 = vmul.f32 %v1338, %v1351
    %v1353 = vadd.f32 %v1352, 0.014752088
    %v1354 = vmul.f32 %v1338, %v1353
    %v1355 = vadd.f32 %v1354, 0.112945676
    %v1356 = vmul.f32 %v1338, %v1355
    %v1357 = vadd.f32 %v1356, 0.4994258
    %v1358 = vmul.f32 %v1338, %v1357
    %v1359 = vadd.f32 %v1358, 1.0
    %v1360 = vrcp.pop %v1359
    %v1361 = vmul.f32 %v1359, %v1360
    %v1362 = vsub.f32 1.0, %v1361
    %v1363 = vmul.f32 %v1360, %v1362
    %v1364 = vadd.f32 %v1360, %v1363
    %vm1365 = vweird.f32 %v1359
    %vm1366 = vweird.f32 %v1360
    %vm1367 = vmor %vm1365, %vm1366
    %v1368 = vsel %vm1367, %v1360, %v1364
    %v1369 = vand.u32 2147483647, %v1359
    %vm1370 = vcmp.eq.f32.partialorder %v1369, 8.507059e+37
    %v1371 = vand.u32 %v1359, 2147483648
    %v1372 = vor.u32 1.1754944e-38, %v1371
    %v1373 = vsel %vm1370, %v1372, %v1368
    %v1374 = vmul.f32 %v1349, %v1373
    %v1375 = vmin.f32 %v1374, 1.0
    %v1376 = vmax.f32 %v1375, -1.0
    %v1377 = vmul.f32 %v182, %v182
    %v1378 = vmin.f32 16.0, %v1377
    %v1379 = vmul.f32 %v1378, 2.1237322e-06
    %v1380 = vadd.f32 %v1379, 0.00028619796
    %v1381 = vmul.f32 %v1378, %v1380
    %v1382 = vadd.f32 %v1381, 0.0036580483
    %v1383 = vmul.f32 %v1378, %v1382
    %v1384 = vadd.f32 %v1383, 0.05243302
    %v1385 = vmul.f32 %v1378, %v1384
    %v1386 = vadd.f32 %v1385, 0.18741608
    %v1387 = vmul.f32 %v1378, %v1386
    %v1388 = vadd.f32 %v1387, 1.1283791
    %v1389 = vmul.f32 %v182, %v1388
    %v1390 = vmul.f32 %v1378, 3.8918573e-05
    %v1391 = vadd.f32 %v1390, 0.001143296
    %v1392 = vmul.f32 %v1378, %v1391
    %v1393 = vadd.f32 %v1392, 0.014752088
    %v1394 = vmul.f32 %v1378, %v1393
    %v1395 = vadd.f32 %v1394, 0.112945676
    %v1396 = vmul.f32 %v1378, %v1395
    %v1397 = vadd.f32 %v1396, 0.4994258
    %v1398 = vmul.f32 %v1378, %v1397
    %v1399 = vadd.f32 %v1398, 1.0
    %v1400 = vrcp.pop %v1399
    %v1401 = vmul.f32 %v1399, %v1400
    %v1402 = vsub.f32 1.0, %v1401
    %v1403 = vmul.f32 %v1400, %v1402
    %v1404 = vadd.f32 %v1400, %v1403
    %vm1405 = vweird.f32 %v1399
    %vm1406 = vweird.f32 %v1400
    %vm1407 = vmor %vm1405, %vm1406
    %v1408 = vsel %vm1407, %v1400, %v1404
    %v1409 = vand.u32 2147483647, %v1399
    %vm1410 = vcmp.eq.f32.partialorder %v1409, 8.507059e+37
    %v1411 = vand.u32 %v1399, 2147483648
    %v1412 = vor.u32 1.1754944e-38, %v1411
    %v1413 = vsel %vm1410, %v1412, %v1408
    %v1414 = vmul.f32 %v1389, %v1413
    %v1415 = vmin.f32 %v1414, 1.0
    %v1416 = vmax.f32 %v1415, -1.0
    %v1417 = vmul.f32 %v183, %v183
    %v1418 = vmin.f32 16.0, %v1417
    %v1419 = vmul.f32 %v1418, 2.1237322e-06
    %v1420 = vadd.f32 %v1419, 0.00028619796
    %v1421 = vmul.f32 %v1418, %v1420
    %v1422 = vadd.f32 %v1421, 0.0036580483
    %v1423 = vmul.f32 %v1418, %v1422
    %v1424 = vadd.f32 %v1423, 0.05243302
    %v1425 = vmul.f32 %v1418, %v1424
    %v1426 = vadd.f32 %v1425, 0.18741608
    %v1427 = vmul.f32 %v1418, %v1426
    %v1428 = vadd.f32 %v1427, 1.1283791
    %v1429 = vmul.f32 %v183, %v1428
    %v1430 = vmul.f32 %v1418, 3.8918573e-05
    %v1431 = vadd.f32 %v1430, 0.001143296
    %v1432 = vmul.f32 %v1418, %v1431
    %v1433 = vadd.f32 %v1432, 0.014752088
    %v1434 = vmul.f32 %v1418, %v1433
    %v1435 = vadd.f32 %v1434, 0.112945676
    %v1436 = vmul.f32 %v1418, %v1435
    %v1437 = vadd.f32 %v1436, 0.4994258
    %v1438 = vmul.f32 %v1418, %v1437
    %v1439 = vadd.f32 %v1438, 1.0
    %v1440 = vrcp.pop %v1439
    %v1441 = vmul.f32 %v1439, %v1440
    %v1442 = vsub.f32 1.0, %v1441
    %v1443 = vmul.f32 %v1440, %v1442
    %v1444 = vadd.f32 %v1440, %v1443
    %vm1445 = vweird.f32 %v1439
    %vm1446 = vweird.f32 %v1440
    %vm1447 = vmor %vm1445, %vm1446
    %v1448 = vsel %vm1447, %v1440, %v1444
    %v1449 = vand.u32 2147483647, %v1439
    %vm1450 = vcmp.eq.f32.partialorder %v1449, 8.507059e+37
    %v1451 = vand.u32 %v1439, 2147483648
    %v1452 = vor.u32 1.1754944e-38, %v1451
    %v1453 = vsel %vm1450, %v1452, %v1448
    %v1454 = vmul.f32 %v1429, %v1453
    %v1455 = vmin.f32 %v1454, 1.0
    %v1456 = vmax.f32 %v1455, -1.0
    %v1457 = vmul.f32 %v184, %v184
    %v1458 = vmin.f32 16.0, %v1457
    %v1459 = vmul.f32 %v1458, 2.1237322e-06
    %v1460 = vadd.f32 %v1459, 0.00028619796
    %v1461 = vmul.f32 %v1458, %v1460
    %v1462 = vadd.f32 %v1461, 0.0036580483
    %v1463 = vmul.f32 %v1458, %v1462
    %v1464 = vadd.f32 %v1463, 0.05243302
    %v1465 = vmul.f32 %v1458, %v1464
    %v1466 = vadd.f32 %v1465, 0.18741608
    %v1467 = vmul.f32 %v1458, %v1466
    %v1468 = vadd.f32 %v1467, 1.1283791
    %v1469 = vmul.f32 %v184, %v1468
    %v1470 = vmul.f32 %v1458, 3.8918573e-05
    %v1471 = vadd.f32 %v1470, 0.001143296
    %v1472 = vmul.f32 %v1458, %v1471
    %v1473 = vadd.f32 %v1472, 0.014752088
    %v1474 = vmul.f32 %v1458, %v1473
    %v1475 = vadd.f32 %v1474, 0.112945676
    %v1476 = vmul.f32 %v1458, %v1475
    %v1477 = vadd.f32 %v1476, 0.4994258
    %v1478 = vmul.f32 %v1458, %v1477
    %v1479 = vadd.f32 %v1478, 1.0
    %v1480 = vrcp.pop %v1479
    %v1481 = vmul.f32 %v1479, %v1480
    %v1482 = vsub.f32 1.0, %v1481
    %v1483 = vmul.f32 %v1480, %v1482
    %v1484 = vadd.f32 %v1480, %v1483
    %vm1485 = vweird.f32 %v1479
    %vm1486 = vweird.f32 %v1480
    %vm1487 = vmor %vm1485, %vm1486
    %v1488 = vsel %vm1487, %v1480, %v1484
    %v1489 = vand.u32 2147483647, %v1479
    %vm1490 = vcmp.eq.f32.partialorder %v1489, 8.507059e+37
    %v1491 = vand.u32 %v1479, 2147483648
    %v1492 = vor.u32 1.1754944e-38, %v1491
    %v1493 = vsel %vm1490, %v1492, %v1488
    %v1494 = vmul.f32 %v1469, %v1493
    %v1495 = vmin.f32 %v1494, 1.0
    %v1496 = vmax.f32 %v1495, -1.0
    %v1497 = vmul.f32 %v185, %v185
    %v1498 = vmin.f32 16.0, %v1497
    %v1499 = vmul.f32 %v1498, 2.1237322e-06
    %v1500 = vadd.f32 %v1499, 0.00028619796
    %v1501 = vmul.f32 %v1498, %v1500
    %v1502 = vadd.f32 %v1501, 0.0036580483
    %v1503 = vmul.f32 %v1498, %v1502
    %v1504 = vadd.f32 %v1503, 0.05243302
    %v1505 = vmul.f32 %v1498, %v1504
    %v1506 = vadd.f32 %v1505, 0.18741608
    %v1507 = vmul.f32 %v1498, %v1506
    %v1508 = vadd.f32 %v1507, 1.1283791
    %v1509 = vmul.f32 %v185, %v1508
    %v1510 = vmul.f32 %v1498, 3.8918573e-05
    %v1511 = vadd.f32 %v1510, 0.001143296
    %v1512 = vmul.f32 %v1498, %v1511
    %v1513 = vadd.f32 %v1512, 0.014752088
    %v1514 = vmul.f32 %v1498, %v1513
    %v1515 = vadd.f32 %v1514, 0.112945676
    %v1516 = vmul.f32 %v1498, %v1515
    %v1517 = vadd.f32 %v1516, 0.4994258
    %v1518 = vmul.f32 %v1498, %v1517
    %v1519 = vadd.f32 %v1518, 1.0
    %v1520 = vrcp.pop %v1519
    %v1521 = vmul.f32 %v1519, %v1520
    %v1522 = vsub.f32 1.0, %v1521
    %v1523 = vmul.f32 %v1520, %v1522
    %v1524 = vadd.f32 %v1520, %v1523
    %vm1525 = vweird.f32 %v1519
    %vm1526 = vweird.f32 %v1520
    %vm1527 = vmor %vm1525, %vm1526
    %v1528 = vsel %vm1527, %v1520, %v1524
    %v1529 = vand.u32 2147483647, %v1519
    %vm1530 = vcmp.eq.f32.partialorder %v1529, 8.507059e+37
    %v1531 = vand.u32 %v1519, 2147483648
    %v1532 = vor.u32 1.1754944e-38, %v1531
    %v1533 = vsel %vm1530, %v1532, %v1528
    %v1534 = vmul.f32 %v1509, %v1533
    %v1535 = vmin.f32 %v1534, 1.0
    %v1536 = vmax.f32 %v1535, -1.0
    %v1537 = vmul.f32 %v186, %v186
    %v1538 = vmin.f32 16.0, %v1537
    %v1539 = vmul.f32 %v1538, 2.1237322e-06
    %v1540 = vadd.f32 %v1539, 0.00028619796
    %v1541 = vmul.f32 %v1538, %v1540
    %v1542 = vadd.f32 %v1541, 0.0036580483
    %v1543 = vmul.f32 %v1538, %v1542
    %v1544 = vadd.f32 %v1543, 0.05243302
    %v1545 = vmul.f32 %v1538, %v1544
    %v1546 = vadd.f32 %v1545, 0.18741608
    %v1547 = vmul.f32 %v1538, %v1546
    %v1548 = vadd.f32 %v1547, 1.1283791
    %v1549 = vmul.f32 %v186, %v1548
    %v1550 = vmul.f32 %v1538, 3.8918573e-05
    %v1551 = vadd.f32 %v1550, 0.001143296
    %v1552 = vmul.f32 %v1538, %v1551
    %v1553 = vadd.f32 %v1552, 0.014752088
    %v1554 = vmul.f32 %v1538, %v1553
    %v1555 = vadd.f32 %v1554, 0.112945676
    %v1556 = vmul.f32 %v1538, %v1555
    %v1557 = vadd.f32 %v1556, 0.4994258
    %v1558 = vmul.f32 %v1538, %v1557
    %v1559 = vadd.f32 %v1558, 1.0
    %v1560 = vrcp.pop %v1559
    %v1561 = vmul.f32 %v1559, %v1560
    %v1562 = vsub.f32 1.0, %v1561
    %v1563 = vmul.f32 %v1560, %v1562
    %v1564 = vadd.f32 %v1560, %v1563
    %vm1565 = vweird.f32 %v1559
    %vm1566 = vweird.f32 %v1560
    %vm1567 = vmor %vm1565, %vm1566
    %v1568 = vsel %vm1567, %v1560, %v1564
    %v1569 = vand.u32 2147483647, %v1559
    %vm1570 = vcmp.eq.f32.partialorder %v1569, 8.507059e+37
    %v1571 = vand.u32 %v1559, 2147483648
    %v1572 = vor.u32 1.1754944e-38, %v1571
    %v1573 = vsel %vm1570, %v1572, %v1568
    %v1574 = vmul.f32 %v1549, %v1573
    %v1575 = vmin.f32 %v1574, 1.0
    %v1576 = vmax.f32 %v1575, -1.0
    %v1577 = vmul.f32 %v187, %v187
    %v1578 = vmin.f32 16.0, %v1577
    %v1579 = vmul.f32 %v1578, 2.1237322e-06
    %v1580 = vadd.f32 %v1579, 0.00028619796
    %v1581 = vmul.f32 %v1578, %v1580
    %v1582 = vadd.f32 %v1581, 0.0036580483
    %v1583 = vmul.f32 %v1578, %v1582
    %v1584 = vadd.f32 %v1583, 0.05243302
    %v1585 = vmul.f32 %v1578, %v1584
    %v1586 = vadd.f32 %v1585, 0.18741608
    %v1587 = vmul.f32 %v1578, %v1586
    %v1588 = vadd.f32 %v1587, 1.1283791
    %v1589 = vmul.f32 %v187, %v1588
    %v1590 = vmul.f32 %v1578, 3.8918573e-05
    %v1591 = vadd.f32 %v1590, 0.001143296
    %v1592 = vmul.f32 %v1578, %v1591
    %v1593 = vadd.f32 %v1592, 0.014752088
    %v1594 = vmul.f32 %v1578, %v1593
    %v1595 = vadd.f32 %v1594, 0.112945676
    %v1596 = vmul.f32 %v1578, %v1595
    %v1597 = vadd.f32 %v1596, 0.4994258
    %v1598 = vmul.f32 %v1578, %v1597
    %v1599 = vadd.f32 %v1598, 1.0
    %v1600 = vrcp.pop %v1599
    %v1601 = vmul.f32 %v1599, %v1600
    %v1602 = vsub.f32 1.0, %v1601
    %v1603 = vmul.f32 %v1600, %v1602
    %v1604 = vadd.f32 %v1600, %v1603
    %vm1605 = vweird.f32 %v1599
    %vm1606 = vweird.f32 %v1600
    %vm1607 = vmor %vm1605, %vm1606
    %v1608 = vsel %vm1607, %v1600, %v1604
    %v1609 = vand.u32 2147483647, %v1599
    %vm1610 = vcmp.eq.f32.partialorder %v1609, 8.507059e+37
    %v1611 = vand.u32 %v1599, 2147483648
    %v1612 = vor.u32 1.1754944e-38, %v1611
    %v1613 = vsel %vm1610, %v1612, %v1608
    %v1614 = vmul.f32 %v1589, %v1613
    %v1615 = vmin.f32 %v1614, 1.0
    %v1616 = vmax.f32 %v1615, -1.0
    %v1617 = vmul.f32 %v188, %v188
    %v1618 = vmin.f32 16.0, %v1617
    %v1619 = vmul.f32 %v1618, 2.1237322e-06
    %v1620 = vadd.f32 %v1619, 0.00028619796
    %v1621 = vmul.f32 %v1618, %v1620
    %v1622 = vadd.f32 %v1621, 0.0036580483
    %v1623 = vmul.f32 %v1618, %v1622
    %v1624 = vadd.f32 %v1623, 0.05243302
    %v1625 = vmul.f32 %v1618, %v1624
    %v1626 = vadd.f32 %v1625, 0.18741608
    %v1627 = vmul.f32 %v1618, %v1626
    %v1628 = vadd.f32 %v1627, 1.1283791
    %v1629 = vmul.f32 %v188, %v1628
    %v1630 = vmul.f32 %v1618, 3.8918573e-05
    %v1631 = vadd.f32 %v1630, 0.001143296
    %v1632 = vmul.f32 %v1618, %v1631
    %v1633 = vadd.f32 %v1632, 0.014752088
    %v1634 = vmul.f32 %v1618, %v1633
    %v1635 = vadd.f32 %v1634, 0.112945676
    %v1636 = vmul.f32 %v1618, %v1635
    %v1637 = vadd.f32 %v1636, 0.4994258
    %v1638 = vmul.f32 %v1618, %v1637
    %v1639 = vadd.f32 %v1638, 1.0
    %v1640 = vrcp.pop %v1639
    %v1641 = vmul.f32 %v1639, %v1640
    %v1642 = vsub.f32 1.0, %v1641
    %v1643 = vmul.f32 %v1640, %v1642
    %v1644 = vadd.f32 %v1640, %v1643
    %vm1645 = vweird.f32 %v1639
    %vm1646 = vweird.f32 %v1640
    %vm1647 = vmor %vm1645, %vm1646
    %v1648 = vsel %vm1647, %v1640, %v1644
    %v1649 = vand.u32 2147483647, %v1639
    %vm1650 = vcmp.eq.f32.partialorder %v1649, 8.507059e+37
    %v1651 = vand.u32 %v1639, 2147483648
    %v1652 = vor.u32 1.1754944e-38, %v1651
    %v1653 = vsel %vm1650, %v1652, %v1648
    %v1654 = vmul.f32 %v1629, %v1653
    %v1655 = vmin.f32 %v1654, 1.0
    %v1656 = vmax.f32 %v1655, -1.0
    %v1657 = vmul.f32 %v189, %v189
    %v1658 = vmin.f32 16.0, %v1657
    %v1659 = vmul.f32 %v1658, 2.1237322e-06
    %v1660 = vadd.f32 %v1659, 0.00028619796
    %v1661 = vmul.f32 %v1658, %v1660
    %v1662 = vadd.f32 %v1661, 0.0036580483
    %v1663 = vmul.f32 %v1658, %v1662
    %v1664 = vadd.f32 %v1663, 0.05243302
    %v1665 = vmul.f32 %v1658, %v1664
    %v1666 = vadd.f32 %v1665, 0.18741608
    %v1667 = vmul.f32 %v1658, %v1666
    %v1668 = vadd.f32 %v1667, 1.1283791
    %v1669 = vmul.f32 %v189, %v1668
    %v1670 = vmul.f32 %v1658, 3.8918573e-05
    %v1671 = vadd.f32 %v1670, 0.001143296
    %v1672 = vmul.f32 %v1658, %v1671
    %v1673 = vadd.f32 %v1672, 0.014752088
    %v1674 = vmul.f32 %v1658, %v1673
    %v1675 = vadd.f32 %v1674, 0.112945676
    %v1676 = vmul.f32 %v1658, %v1675
    %v1677 = vadd.f32 %v1676, 0.4994258
    %v1678 = vmul.f32 %v1658, %v1677
    %v1679 = vadd.f32 %v1678, 1.0
    %v1680 = vrcp.pop %v1679
    %v1681 = vmul.f32 %v1679, %v1680
    %v1682 = vsub.f32 1.0, %v1681
    %v1683 = vmul.f32 %v1680, %v1682
    %v1684 = vadd.f32 %v1680, %v1683
    %vm1685 = vweird.f32 %v1679
    %vm1686 = vweird.f32 %v1680
    %vm1687 = vmor %vm1685, %vm1686
    %v1688 = vsel %vm1687, %v1680, %v1684
    %v1689 = vand.u32 2147483647, %v1679
    %vm1690 = vcmp.eq.f32.partialorder %v1689, 8.507059e+37
    %v1691 = vand.u32 %v1679, 2147483648
    %v1692 = vor.u32 1.1754944e-38, %v1691
    %v1693 = vsel %vm1690, %v1692, %v1688
    %v1694 = vmul.f32 %v1669, %v1693
    %v1695 = vmin.f32 %v1694, 1.0
    %v1696 = vmax.f32 %v1695, -1.0
    %v1697 = vmul.f32 %v190, %v190
    %v1698 = vmin.f32 16.0, %v1697
    %v1699 = vmul.f32 %v1698, 2.1237322e-06
    %v1700 = vadd.f32 %v1699, 0.00028619796
    %v1701 = vmul.f32 %v1698, %v1700
    %v1702 = vadd.f32 %v1701, 0.0036580483
    %v1703 = vmul.f32 %v1698, %v1702
    %v1704 = vadd.f32 %v1703, 0.05243302
    %v1705 = vmul.f32 %v1698, %v1704
    %v1706 = vadd.f32 %v1705, 0.18741608
    %v1707 = vmul.f32 %v1698, %v1706
    %v1708 = vadd.f32 %v1707, 1.1283791
    %v1709 = vmul.f32 %v190, %v1708
    %v1710 = vmul.f32 %v1698, 3.8918573e-05
    %v1711 = vadd.f32 %v1710, 0.001143296
    %v1712 = vmul.f32 %v1698, %v1711
    %v1713 = vadd.f32 %v1712, 0.014752088
    %v1714 = vmul.f32 %v1698, %v1713
    %v1715 = vadd.f32 %v1714, 0.112945676
    %v1716 = vmul.f32 %v1698, %v1715
    %v1717 = vadd.f32 %v1716, 0.4994258
    %v1718 = vmul.f32 %v1698, %v1717
    %v1719 = vadd.f32 %v1718, 1.0
    %v1720 = vrcp.pop %v1719
    %v1721 = vmul.f32 %v1719, %v1720
    %v1722 = vsub.f32 1.0, %v1721
    %v1723 = vmul.f32 %v1720, %v1722
    %v1724 = vadd.f32 %v1720, %v1723
    %vm1725 = vweird.f32 %v1719
    %vm1726 = vweird.f32 %v1720
    %vm1727 = vmor %vm1725, %vm1726
    %v1728 = vsel %vm1727, %v1720, %v1724
    %v1729 = vand.u32 2147483647, %v1719
    %vm1730 = vcmp.eq.f32.partialorder %v1729, 8.507059e+37
    %v1731 = vand.u32 %v1719, 2147483648
    %v1732 = vor.u32 1.1754944e-38, %v1731
    %v1733 = vsel %vm1730, %v1732, %v1728
    %v1734 = vmul.f32 %v1709, %v1733
    %v1735 = vmin.f32 %v1734, 1.0
    %v1736 = vmax.f32 %v1735, -1.0
    %v1737 = vmul.f32 %v191, %v191
    %v1738 = vmin.f32 16.0, %v1737
    %v1739 = vmul.f32 %v1738, 2.1237322e-06
    %v1740 = vadd.f32 %v1739, 0.00028619796
    %v1741 = vmul.f32 %v1738, %v1740
    %v1742 = vadd.f32 %v1741, 0.0036580483
    %v1743 = vmul.f32 %v1738, %v1742
    %v1744 = vadd.f32 %v1743, 0.05243302
    %v1745 = vmul.f32 %v1738, %v1744
    %v1746 = vadd.f32 %v1745, 0.18741608
    %v1747 = vmul.f32 %v1738, %v1746
    %v1748 = vadd.f32 %v1747, 1.1283791
    %v1749 = vmul.f32 %v191, %v1748
    %v1750 = vmul.f32 %v1738, 3.8918573e-05
    %v1751 = vadd.f32 %v1750, 0.001143296
    %v1752 = vmul.f32 %v1738, %v1751
    %v1753 = vadd.f32 %v1752, 0.014752088
    %v1754 = vmul.f32 %v1738, %v1753
    %v1755 = vadd.f32 %v1754, 0.112945676
    %v1756 = vmul.f32 %v1738, %v1755
    %v1757 = vadd.f32 %v1756, 0.4994258
    %v1758 = vmul.f32 %v1738, %v1757
    %v1759 = vadd.f32 %v1758, 1.0
    %v1760 = vrcp.pop %v1759
    %v1761 = vmul.f32 %v1759, %v1760
    %v1762 = vsub.f32 1.0, %v1761
    %v1763 = vmul.f32 %v1760, %v1762
    %v1764 = vadd.f32 %v1760, %v1763
    %vm1765 = vweird.f32 %v1759
    %vm1766 = vweird.f32 %v1760
    %vm1767 = vmor %vm1765, %vm1766
    %v1768 = vsel %vm1767, %v1760, %v1764
    %v1769 = vand.u32 2147483647, %v1759
    %vm1770 = vcmp.eq.f32.partialorder %v1769, 8.507059e+37
    %v1771 = vand.u32 %v1759, 2147483648
    %v1772 = vor.u32 1.1754944e-38, %v1771
    %v1773 = vsel %vm1770, %v1772, %v1768
    %v1774 = vmul.f32 %v1749, %v1773
    %v1775 = vmin.f32 %v1774, 1.0
    %v1776 = vmax.f32 %v1775, -1.0
    %v1777 = vmul.f32 %v192, %v192
    %v1778 = vmin.f32 16.0, %v1777
    %v1779 = vmul.f32 %v1778, 2.1237322e-06
    %v1780 = vadd.f32 %v1779, 0.00028619796
    %v1781 = vmul.f32 %v1778, %v1780
    %v1782 = vadd.f32 %v1781, 0.0036580483
    %v1783 = vmul.f32 %v1778, %v1782
    %v1784 = vadd.f32 %v1783, 0.05243302
    %v1785 = vmul.f32 %v1778, %v1784
    %v1786 = vadd.f32 %v1785, 0.18741608
    %v1787 = vmul.f32 %v1778, %v1786
    %v1788 = vadd.f32 %v1787, 1.1283791
    %v1789 = vmul.f32 %v192, %v1788
    %v1790 = vmul.f32 %v1778, 3.8918573e-05
    %v1791 = vadd.f32 %v1790, 0.001143296
    %v1792 = vmul.f32 %v1778, %v1791
    %v1793 = vadd.f32 %v1792, 0.014752088
    %v1794 = vmul.f32 %v1778, %v1793
    %v1795 = vadd.f32 %v1794, 0.112945676
    %v1796 = vmul.f32 %v1778, %v1795
    %v1797 = vadd.f32 %v1796, 0.4994258
    %v1798 = vmul.f32 %v1778, %v1797
    %v1799 = vadd.f32 %v1798, 1.0
    %v1800 = vrcp.pop %v1799
    %v1801 = vmul.f32 %v1799, %v1800
    %v1802 = vsub.f32 1.0, %v1801
    %v1803 = vmul.f32 %v1800, %v1802
    %v1804 = vadd.f32 %v1800, %v1803
    %vm1805 = vweird.f32 %v1799
    %vm1806 = vweird.f32 %v1800
    %vm1807 = vmor %vm1805, %vm1806
    %v1808 = vsel %vm1807, %v1800, %v1804
    %v1809 = vand.u32 2147483647, %v1799
    %vm1810 = vcmp.eq.f32.partialorder %v1809, 8.507059e+37
    %v1811 = vand.u32 %v1799, 2147483648
    %v1812 = vor.u32 1.1754944e-38, %v1811
    %v1813 = vsel %vm1810, %v1812, %v1808
    %v1814 = vmul.f32 %v1789, %v1813
    %v1815 = vmin.f32 %v1814, 1.0
    %v1816 = vmax.f32 %v1815, -1.0
    %v1817 = vmul.f32 %v193, %v193
    %v1818 = vmin.f32 16.0, %v1817
    %v1819 = vmul.f32 %v1818, 2.1237322e-06
    %v1820 = vadd.f32 %v1819, 0.00028619796
    %v1821 = vmul.f32 %v1818, %v1820
    %v1822 = vadd.f32 %v1821, 0.0036580483
    %v1823 = vmul.f32 %v1818, %v1822
    %v1824 = vadd.f32 %v1823, 0.05243302
    %v1825 = vmul.f32 %v1818, %v1824
    %v1826 = vadd.f32 %v1825, 0.18741608
    %v1827 = vmul.f32 %v1818, %v1826
    %v1828 = vadd.f32 %v1827, 1.1283791
    %v1829 = vmul.f32 %v193, %v1828
    %v1830 = vmul.f32 %v1818, 3.8918573e-05
    %v1831 = vadd.f32 %v1830, 0.001143296
    %v1832 = vmul.f32 %v1818, %v1831
    %v1833 = vadd.f32 %v1832, 0.014752088
    %v1834 = vmul.f32 %v1818, %v1833
    %v1835 = vadd.f32 %v1834, 0.112945676
    %v1836 = vmul.f32 %v1818, %v1835
    %v1837 = vadd.f32 %v1836, 0.4994258
    %v1838 = vmul.f32 %v1818, %v1837
    %v1839 = vadd.f32 %v1838, 1.0
    %v1840 = vrcp.pop %v1839
    %v1841 = vmul.f32 %v1839, %v1840
    %v1842 = vsub.f32 1.0, %v1841
    %v1843 = vmul.f32 %v1840, %v1842
    %v1844 = vadd.f32 %v1840, %v1843
    %vm1845 = vweird.f32 %v1839
    %vm1846 = vweird.f32 %v1840
    %vm1847 = vmor %vm1845, %vm1846
    %v1848 = vsel %vm1847, %v1840, %v1844
    %v1849 = vand.u32 2147483647, %v1839
    %vm1850 = vcmp.eq.f32.partialorder %v1849, 8.507059e+37
    %v1851 = vand.u32 %v1839, 2147483648
    %v1852 = vor.u32 1.1754944e-38, %v1851
    %v1853 = vsel %vm1850, %v1852, %v1848
    %v1854 = vmul.f32 %v1829, %v1853
    %v1855 = vmin.f32 %v1854, 1.0
    %v1856 = vmax.f32 %v1855, -1.0
    %v1857 = vmul.f32 %v194, %v194
    %v1858 = vmin.f32 16.0, %v1857
    %v1859 = vmul.f32 %v1858, 2.1237322e-06
    %v1860 = vadd.f32 %v1859, 0.00028619796
    %v1861 = vmul.f32 %v1858, %v1860
    %v1862 = vadd.f32 %v1861, 0.0036580483
    %v1863 = vmul.f32 %v1858, %v1862
    %v1864 = vadd.f32 %v1863, 0.05243302
    %v1865 = vmul.f32 %v1858, %v1864
    %v1866 = vadd.f32 %v1865, 0.18741608
    %v1867 = vmul.f32 %v1858, %v1866
    %v1868 = vadd.f32 %v1867, 1.1283791
    %v1869 = vmul.f32 %v194, %v1868
    %v1870 = vmul.f32 %v1858, 3.8918573e-05
    %v1871 = vadd.f32 %v1870, 0.001143296
    %v1872 = vmul.f32 %v1858, %v1871
    %v1873 = vadd.f32 %v1872, 0.014752088
    %v1874 = vmul.f32 %v1858, %v1873
    %v1875 = vadd.f32 %v1874, 0.112945676
    %v1876 = vmul.f32 %v1858, %v1875
    %v1877 = vadd.f32 %v1876, 0.4994258
    %v1878 = vmul.f32 %v1858, %v1877
    %v1879 = vadd.f32 %v1878, 1.0
    %v1880 = vrcp.pop %v1879
    %v1881 = vmul.f32 %v1879, %v1880
    %v1882 = vsub.f32 1.0, %v1881
    %v1883 = vmul.f32 %v1880, %v1882
    %v1884 = vadd.f32 %v1880, %v1883
    %vm1885 = vweird.f32 %v1879
    %vm1886 = vweird.f32 %v1880
    %vm1887 = vmor %vm1885, %vm1886
    %v1888 = vsel %vm1887, %v1880, %v1884
    %v1889 = vand.u32 2147483647, %v1879
    %vm1890 = vcmp.eq.f32.partialorder %v1889, 8.507059e+37
    %v1891 = vand.u32 %v1879, 2147483648
    %v1892 = vor.u32 1.1754944e-38, %v1891
    %v1893 = vsel %vm1890, %v1892, %v1888
    %v1894 = vmul.f32 %v1869, %v1893
    %v1895 = vmin.f32 %v1894, 1.0
    %v1896 = vmax.f32 %v1895, -1.0
    %v1897 = vmul.f32 %v195, %v195
    %v1898 = vmin.f32 16.0, %v1897
    %v1899 = vmul.f32 %v1898, 2.1237322e-06
    %v1900 = vadd.f32 %v1899, 0.00028619796
    %v1901 = vmul.f32 %v1898, %v1900
    %v1902 = vadd.f32 %v1901, 0.0036580483
    %v1903 = vmul.f32 %v1898, %v1902
    %v1904 = vadd.f32 %v1903, 0.05243302
    %v1905 = vmul.f32 %v1898, %v1904
    %v1906 = vadd.f32 %v1905, 0.18741608
    %v1907 = vmul.f32 %v1898, %v1906
    %v1908 = vadd.f32 %v1907, 1.1283791
    %v1909 = vmul.f32 %v195, %v1908
    %v1910 = vmul.f32 %v1898, 3.8918573e-05
    %v1911 = vadd.f32 %v1910, 0.001143296
    %v1912 = vmul.f32 %v1898, %v1911
    %v1913 = vadd.f32 %v1912, 0.014752088
    %v1914 = vmul.f32 %v1898, %v1913
    %v1915 = vadd.f32 %v1914, 0.112945676
    %v1916 = vmul.f32 %v1898, %v1915
    %v1917 = vadd.f32 %v1916, 0.4994258
    %v1918 = vmul.f32 %v1898, %v1917
    %v1919 = vadd.f32 %v1918, 1.0
    %v1920 = vrcp.pop %v1919
    %v1921 = vmul.f32 %v1919, %v1920
    %v1922 = vsub.f32 1.0, %v1921
    %v1923 = vmul.f32 %v1920, %v1922
    %v1924 = vadd.f32 %v1920, %v1923
    %vm1925 = vweird.f32 %v1919
    %vm1926 = vweird.f32 %v1920
    %vm1927 = vmor %vm1925, %vm1926
    %v1928 = vsel %vm1927, %v1920, %v1924
    %v1929 = vand.u32 2147483647, %v1919
    %vm1930 = vcmp.eq.f32.partialorder %v1929, 8.507059e+37
    %v1931 = vand.u32 %v1919, 2147483648
    %v1932 = vor.u32 1.1754944e-38, %v1931
    %v1933 = vsel %vm1930, %v1932, %v1928
    %v1934 = vmul.f32 %v1909, %v1933
    %v1935 = vmin.f32 %v1934, 1.0
    %v1936 = vmax.f32 %v1935, -1.0
    %v1937 = vmul.f32 %v196, %v196
    %v1938 = vmin.f32 16.0, %v1937
    %v1939 = vmul.f32 %v1938, 2.1237322e-06
    %v1940 = vadd.f32 %v1939, 0.00028619796
    %v1941 = vmul.f32 %v1938, %v1940
    %v1942 = vadd.f32 %v1941, 0.0036580483
    %v1943 = vmul.f32 %v1938, %v1942
    %v1944 = vadd.f32 %v1943, 0.05243302
    %v1945 = vmul.f32 %v1938, %v1944
    %v1946 = vadd.f32 %v1945, 0.18741608
    %v1947 = vmul.f32 %v1938, %v1946
    %v1948 = vadd.f32 %v1947, 1.1283791
    %v1949 = vmul.f32 %v196, %v1948
    %v1950 = vmul.f32 %v1938, 3.8918573e-05
    %v1951 = vadd.f32 %v1950, 0.001143296
    %v1952 = vmul.f32 %v1938, %v1951
    %v1953 = vadd.f32 %v1952, 0.014752088
    %v1954 = vmul.f32 %v1938, %v1953
    %v1955 = vadd.f32 %v1954, 0.112945676
    %v1956 = vmul.f32 %v1938, %v1955
    %v1957 = vadd.f32 %v1956, 0.4994258
    %v1958 = vmul.f32 %v1938, %v1957
    %v1959 = vadd.f32 %v1958, 1.0
    %v1960 = vrcp.pop %v1959
    %v1961 = vmul.f32 %v1959, %v1960
    %v1962 = vsub.f32 1.0, %v1961
    %v1963 = vmul.f32 %v1960, %v1962
    %v1964 = vadd.f32 %v1960, %v1963
    %vm1965 = vweird.f32 %v1959
    %vm1966 = vweird.f32 %v1960
    %vm1967 = vmor %vm1965, %vm1966
    %v1968 = vsel %vm1967, %v1960, %v1964
    %v1969 = vand.u32 2147483647, %v1959
    %vm1970 = vcmp.eq.f32.partialorder %v1969, 8.507059e+37
    %v1971 = vand.u32 %v1959, 2147483648
    %v1972 = vor.u32 1.1754944e-38, %v1971
    %v1973 = vsel %vm1970, %v1972, %v1968
    %v1974 = vmul.f32 %v1949, %v1973
    %v1975 = vmin.f32 %v1974, 1.0
    %v1976 = vmax.f32 %v1975, -1.0
    %v1977 = vmul.f32 %v197, %v197
    %v1978 = vmin.f32 16.0, %v1977
    %v1979 = vmul.f32 %v1978, 2.1237322e-06
    %v1980 = vadd.f32 %v1979, 0.00028619796
    %v1981 = vmul.f32 %v1978, %v1980
    %v1982 = vadd.f32 %v1981, 0.0036580483
    %v1983 = vmul.f32 %v1978, %v1982
    %v1984 = vadd.f32 %v1983, 0.05243302
    %v1985 = vmul.f32 %v1978, %v1984
    %v1986 = vadd.f32 %v1985, 0.18741608
    %v1987 = vmul.f32 %v1978, %v1986
    %v1988 = vadd.f32 %v1987, 1.1283791
    %v1989 = vmul.f32 %v197, %v1988
    %v1990 = vmul.f32 %v1978, 3.8918573e-05
    %v1991 = vadd.f32 %v1990, 0.001143296
    %v1992 = vmul.f32 %v1978, %v1991
    %v1993 = vadd.f32 %v1992, 0.014752088
    %v1994 = vmul.f32 %v1978, %v1993
    %v1995 = vadd.f32 %v1994, 0.112945676
    %v1996 = vmul.f32 %v1978, %v1995
    %v1997 = vadd.f32 %v1996, 0.4994258
    %v1998 = vmul.f32 %v1978, %v1997
    %v1999 = vadd.f32 %v1998, 1.0
    %v2000 = vrcp.pop %v1999
    %v2001 = vmul.f32 %v1999, %v2000
    %v2002 = vsub.f32 1.0, %v2001
    %v2003 = vmul.f32 %v2000, %v2002
    %v2004 = vadd.f32 %v2000, %v2003
    %vm2005 = vweird.f32 %v1999
    %vm2006 = vweird.f32 %v2000
    %vm2007 = vmor %vm2005, %vm2006
    %v2008 = vsel %vm2007, %v2000, %v2004
    %v2009 = vand.u32 2147483647, %v1999
    %vm2010 = vcmp.eq.f32.partialorder %v2009, 8.507059e+37
    %v2011 = vand.u32 %v1999, 2147483648
    %v2012 = vor.u32 1.1754944e-38, %v2011
    %v2013 = vsel %vm2010, %v2012, %v2008
    %v2014 = vmul.f32 %v1989, %v2013
    %v2015 = vmin.f32 %v2014, 1.0
    %v2016 = vmax.f32 %v2015, -1.0
    %v2017 = vmul.f32 %v198, %v198
    %v2018 = vmin.f32 16.0, %v2017
    %v2019 = vmul.f32 %v2018, 2.1237322e-06
    %v2020 = vadd.f32 %v2019, 0.00028619796
    %v2021 = vmul.f32 %v2018, %v2020
    %v2022 = vadd.f32 %v2021, 0.0036580483
    %v2023 = vmul.f32 %v2018, %v2022
    %v2024 = vadd.f32 %v2023, 0.05243302
    %v2025 = vmul.f32 %v2018, %v2024
    %v2026 = vadd.f32 %v2025, 0.18741608
    %v2027 = vmul.f32 %v2018, %v2026
    %v2028 = vadd.f32 %v2027, 1.1283791
    %v2029 = vmul.f32 %v198, %v2028
    %v2030 = vmul.f32 %v2018, 3.8918573e-05
    %v2031 = vadd.f32 %v2030, 0.001143296
    %v2032 = vmul.f32 %v2018, %v2031
    %v2033 = vadd.f32 %v2032, 0.014752088
    %v2034 = vmul.f32 %v2018, %v2033
    %v2035 = vadd.f32 %v2034, 0.112945676
    %v2036 = vmul.f32 %v2018, %v2035
    %v2037 = vadd.f32 %v2036, 0.4994258
    %v2038 = vmul.f32 %v2018, %v2037
    %v2039 = vadd.f32 %v2038, 1.0
    %v2040 = vrcp.pop %v2039
    %v2041 = vmul.f32 %v2039, %v2040
    %v2042 = vsub.f32 1.0, %v2041
    %v2043 = vmul.f32 %v2040, %v2042
    %v2044 = vadd.f32 %v2040, %v2043
    %vm2045 = vweird.f32 %v2039
    %vm2046 = vweird.f32 %v2040
    %vm2047 = vmor %vm2045, %vm2046
    %v2048 = vsel %vm2047, %v2040, %v2044
    %v2049 = vand.u32 2147483647, %v2039
    %vm2050 = vcmp.eq.f32.partialorder %v2049, 8.507059e+37
    %v2051 = vand.u32 %v2039, 2147483648
    %v2052 = vor.u32 1.1754944e-38, %v2051
    %v2053 = vsel %vm2050, %v2052, %v2048
    %v2054 = vmul.f32 %v2029, %v2053
    %v2055 = vmin.f32 %v2054, 1.0
    %v2056 = vmax.f32 %v2055, -1.0
    %v2057 = vmul.f32 %v199, %v199
    %v2058 = vmin.f32 16.0, %v2057
    %v2059 = vmul.f32 %v2058, 2.1237322e-06
    %v2060 = vadd.f32 %v2059, 0.00028619796
    %v2061 = vmul.f32 %v2058, %v2060
    %v2062 = vadd.f32 %v2061, 0.0036580483
    %v2063 = vmul.f32 %v2058, %v2062
    %v2064 = vadd.f32 %v2063, 0.05243302
    %v2065 = vmul.f32 %v2058, %v2064
    %v2066 = vadd.f32 %v2065, 0.18741608
    %v2067 = vmul.f32 %v2058, %v2066
    %v2068 = vadd.f32 %v2067, 1.1283791
    %v2069 = vmul.f32 %v199, %v2068
    %v2070 = vmul.f32 %v2058, 3.8918573e-05
    %v2071 = vadd.f32 %v2070, 0.001143296
    %v2072 = vmul.f32 %v2058, %v2071
    %v2073 = vadd.f32 %v2072, 0.014752088
    %v2074 = vmul.f32 %v2058, %v2073
    %v2075 = vadd.f32 %v2074, 0.112945676
    %v2076 = vmul.f32 %v2058, %v2075
    %v2077 = vadd.f32 %v2076, 0.4994258
    %v2078 = vmul.f32 %v2058, %v2077
    %v2079 = vadd.f32 %v2078, 1.0
    %v2080 = vrcp.pop %v2079
    %v2081 = vmul.f32 %v2079, %v2080
    %v2082 = vsub.f32 1.0, %v2081
    %v2083 = vmul.f32 %v2080, %v2082
    %v2084 = vadd.f32 %v2080, %v2083
    %vm2085 = vweird.f32 %v2079
    %vm2086 = vweird.f32 %v2080
    %vm2087 = vmor %vm2085, %vm2086
    %v2088 = vsel %vm2087, %v2080, %v2084
    %v2089 = vand.u32 2147483647, %v2079
    %vm2090 = vcmp.eq.f32.partialorder %v2089, 8.507059e+37
    %v2091 = vand.u32 %v2079, 2147483648
    %v2092 = vor.u32 1.1754944e-38, %v2091
    %v2093 = vsel %vm2090, %v2092, %v2088
    %v2094 = vmul.f32 %v2069, %v2093
    %v2095 = vmin.f32 %v2094, 1.0
    %v2096 = vmax.f32 %v2095, -1.0
    %v2097 = vmul.f32 %v200, %v200
    %v2098 = vmin.f32 16.0, %v2097
    %v2099 = vmul.f32 %v2098, 2.1237322e-06
    %v2100 = vadd.f32 %v2099, 0.00028619796
    %v2101 = vmul.f32 %v2098, %v2100
    %v2102 = vadd.f32 %v2101, 0.0036580483
    %v2103 = vmul.f32 %v2098, %v2102
    %v2104 = vadd.f32 %v2103, 0.05243302
    %v2105 = vmul.f32 %v2098, %v2104
    %v2106 = vadd.f32 %v2105, 0.18741608
    %v2107 = vmul.f32 %v2098, %v2106
    %v2108 = vadd.f32 %v2107, 1.1283791
    %v2109 = vmul.f32 %v200, %v2108
    %v2110 = vmul.f32 %v2098, 3.8918573e-05
    %v2111 = vadd.f32 %v2110, 0.001143296
    %v2112 = vmul.f32 %v2098, %v2111
    %v2113 = vadd.f32 %v2112, 0.014752088
    %v2114 = vmul.f32 %v2098, %v2113
    %v2115 = vadd.f32 %v2114, 0.112945676
    %v2116 = vmul.f32 %v2098, %v2115
    %v2117 = vadd.f32 %v2116, 0.4994258
    %v2118 = vmul.f32 %v2098, %v2117
    %v2119 = vadd.f32 %v2118, 1.0
    %v2120 = vrcp.pop %v2119
    %v2121 = vmul.f32 %v2119, %v2120
    %v2122 = vsub.f32 1.0, %v2121
    %v2123 = vmul.f32 %v2120, %v2122
    %v2124 = vadd.f32 %v2120, %v2123
    %vm2125 = vweird.f32 %v2119
    %vm2126 = vweird.f32 %v2120
    %vm2127 = vmor %vm2125, %vm2126
    %v2128 = vsel %vm2127, %v2120, %v2124
    %v2129 = vand.u32 2147483647, %v2119
    %vm2130 = vcmp.eq.f32.partialorder %v2129, 8.507059e+37
    %v2131 = vand.u32 %v2119, 2147483648
    %v2132 = vor.u32 1.1754944e-38, %v2131
    %v2133 = vsel %vm2130, %v2132, %v2128
    %v2134 = vmul.f32 %v2109, %v2133
    %v2135 = vmin.f32 %v2134, 1.0
    %v2136 = vmax.f32 %v2135, -1.0
    %v2137 = vmul.f32 %v201, %v201
    %v2138 = vmin.f32 16.0, %v2137
    %v2139 = vmul.f32 %v2138, 2.1237322e-06
    %v2140 = vadd.f32 %v2139, 0.00028619796
    %v2141 = vmul.f32 %v2138, %v2140
    %v2142 = vadd.f32 %v2141, 0.0036580483
    %v2143 = vmul.f32 %v2138, %v2142
    %v2144 = vadd.f32 %v2143, 0.05243302
    %v2145 = vmul.f32 %v2138, %v2144
    %v2146 = vadd.f32 %v2145, 0.18741608
    %v2147 = vmul.f32 %v2138, %v2146
    %v2148 = vadd.f32 %v2147, 1.1283791
    %v2149 = vmul.f32 %v201, %v2148
    %v2150 = vmul.f32 %v2138, 3.8918573e-05
    %v2151 = vadd.f32 %v2150, 0.001143296
    %v2152 = vmul.f32 %v2138, %v2151
    %v2153 = vadd.f32 %v2152, 0.014752088
    %v2154 = vmul.f32 %v2138, %v2153
    %v2155 = vadd.f32 %v2154, 0.112945676
    %v2156 = vmul.f32 %v2138, %v2155
    %v2157 = vadd.f32 %v2156, 0.4994258
    %v2158 = vmul.f32 %v2138, %v2157
    %v2159 = vadd.f32 %v2158, 1.0
    %v2160 = vrcp.pop %v2159
    %v2161 = vmul.f32 %v2159, %v2160
    %v2162 = vsub.f32 1.0, %v2161
    %v2163 = vmul.f32 %v2160, %v2162
    %v2164 = vadd.f32 %v2160, %v2163
    %vm2165 = vweird.f32 %v2159
    %vm2166 = vweird.f32 %v2160
    %vm2167 = vmor %vm2165, %vm2166
    %v2168 = vsel %vm2167, %v2160, %v2164
    %v2169 = vand.u32 2147483647, %v2159
    %vm2170 = vcmp.eq.f32.partialorder %v2169, 8.507059e+37
    %v2171 = vand.u32 %v2159, 2147483648
    %v2172 = vor.u32 1.1754944e-38, %v2171
    %v2173 = vsel %vm2170, %v2172, %v2168
    %v2174 = vmul.f32 %v2149, %v2173
    %v2175 = vmin.f32 %v2174, 1.0
    %v2176 = vmax.f32 %v2175, -1.0
    %v2177 = vmul.f32 %v202, %v202
    %v2178 = vmin.f32 16.0, %v2177
    %v2179 = vmul.f32 %v2178, 2.1237322e-06
    %v2180 = vadd.f32 %v2179, 0.00028619796
    %v2181 = vmul.f32 %v2178, %v2180
    %v2182 = vadd.f32 %v2181, 0.0036580483
    %v2183 = vmul.f32 %v2178, %v2182
    %v2184 = vadd.f32 %v2183, 0.05243302
    %v2185 = vmul.f32 %v2178, %v2184
    %v2186 = vadd.f32 %v2185, 0.18741608
    %v2187 = vmul.f32 %v2178, %v2186
    %v2188 = vadd.f32 %v2187, 1.1283791
    %v2189 = vmul.f32 %v202, %v2188
    %v2190 = vmul.f32 %v2178, 3.8918573e-05
    %v2191 = vadd.f32 %v2190, 0.001143296
    %v2192 = vmul.f32 %v2178, %v2191
    %v2193 = vadd.f32 %v2192, 0.014752088
    %v2194 = vmul.f32 %v2178, %v2193
    %v2195 = vadd.f32 %v2194, 0.112945676
    %v2196 = vmul.f32 %v2178, %v2195
    %v2197 = vadd.f32 %v2196, 0.4994258
    %v2198 = vmul.f32 %v2178, %v2197
    %v2199 = vadd.f32 %v2198, 1.0
    %v2200 = vrcp.pop %v2199
    %v2201 = vmul.f32 %v2199, %v2200
    %v2202 = vsub.f32 1.0, %v2201
    %v2203 = vmul.f32 %v2200, %v2202
    %v2204 = vadd.f32 %v2200, %v2203
    %vm2205 = vweird.f32 %v2199
    %vm2206 = vweird.f32 %v2200
    %vm2207 = vmor %vm2205, %vm2206
    %v2208 = vsel %vm2207, %v2200, %v2204
    %v2209 = vand.u32 2147483647, %v2199
    %vm2210 = vcmp.eq.f32.partialorder %v2209, 8.507059e+37
    %v2211 = vand.u32 %v2199, 2147483648
    %v2212 = vor.u32 1.1754944e-38, %v2211
    %v2213 = vsel %vm2210, %v2212, %v2208
    %v2214 = vmul.f32 %v2189, %v2213
    %v2215 = vmin.f32 %v2214, 1.0
    %v2216 = vmax.f32 %v2215, -1.0
    %v2217 = vmul.f32 %v203, %v203
    %v2218 = vmin.f32 16.0, %v2217
    %v2219 = vmul.f32 %v2218, 2.1237322e-06
    %v2220 = vadd.f32 %v2219, 0.00028619796
    %v2221 = vmul.f32 %v2218, %v2220
    %v2222 = vadd.f32 %v2221, 0.0036580483
    %v2223 = vmul.f32 %v2218, %v2222
    %v2224 = vadd.f32 %v2223, 0.05243302
    %v2225 = vmul.f32 %v2218, %v2224
    %v2226 = vadd.f32 %v2225, 0.18741608
    %v2227 = vmul.f32 %v2218, %v2226
    %v2228 = vadd.f32 %v2227, 1.1283791
    %v2229 = vmul.f32 %v203, %v2228
    %v2230 = vmul.f32 %v2218, 3.8918573e-05
    %v2231 = vadd.f32 %v2230, 0.001143296
    %v2232 = vmul.f32 %v2218, %v2231
    %v2233 = vadd.f32 %v2232, 0.014752088
    %v2234 = vmul.f32 %v2218, %v2233
    %v2235 = vadd.f32 %v2234, 0.112945676
    %v2236 = vmul.f32 %v2218, %v2235
    %v2237 = vadd.f32 %v2236, 0.4994258
    %v2238 = vmul.f32 %v2218, %v2237
    %v2239 = vadd.f32 %v2238, 1.0
    %v2240 = vrcp.pop %v2239
    %v2241 = vmul.f32 %v2239, %v2240
    %v2242 = vsub.f32 1.0, %v2241
    %v2243 = vmul.f32 %v2240, %v2242
    %v2244 = vadd.f32 %v2240, %v2243
    %vm2245 = vweird.f32 %v2239
    %vm2246 = vweird.f32 %v2240
    %vm2247 = vmor %vm2245, %vm2246
    %v2248 = vsel %vm2247, %v2240, %v2244
    %v2249 = vand.u32 2147483647, %v2239
    %vm2250 = vcmp.eq.f32.partialorder %v2249, 8.507059e+37
    %v2251 = vand.u32 %v2239, 2147483648
    %v2252 = vor.u32 1.1754944e-38, %v2251
    %v2253 = vsel %vm2250, %v2252, %v2248
    %v2254 = vmul.f32 %v2229, %v2253
    %v2255 = vmin.f32 %v2254, 1.0
    %v2256 = vmax.f32 %v2255, -1.0
    %v2257 = vmul.f32 %v204, %v204
    %v2258 = vmin.f32 16.0, %v2257
    %v2259 = vmul.f32 %v2258, 2.1237322e-06
    %v2260 = vadd.f32 %v2259, 0.00028619796
    %v2261 = vmul.f32 %v2258, %v2260
    %v2262 = vadd.f32 %v2261, 0.0036580483
    %v2263 = vmul.f32 %v2258, %v2262
    %v2264 = vadd.f32 %v2263, 0.05243302
    %v2265 = vmul.f32 %v2258, %v2264
    %v2266 = vadd.f32 %v2265, 0.18741608
    %v2267 = vmul.f32 %v2258, %v2266
    %v2268 = vadd.f32 %v2267, 1.1283791
    %v2269 = vmul.f32 %v204, %v2268
    %v2270 = vmul.f32 %v2258, 3.8918573e-05
    %v2271 = vadd.f32 %v2270, 0.001143296
    %v2272 = vmul.f32 %v2258, %v2271
    %v2273 = vadd.f32 %v2272, 0.014752088
    %v2274 = vmul.f32 %v2258, %v2273
    %v2275 = vadd.f32 %v2274, 0.112945676
    %v2276 = vmul.f32 %v2258, %v2275
    %v2277 = vadd.f32 %v2276, 0.4994258
    %v2278 = vmul.f32 %v2258, %v2277
    %v2279 = vadd.f32 %v2278, 1.0
    %v2280 = vrcp.pop %v2279
    %v2281 = vmul.f32 %v2279, %v2280
    %v2282 = vsub.f32 1.0, %v2281
    %v2283 = vmul.f32 %v2280, %v2282
    %v2284 = vadd.f32 %v2280, %v2283
    %vm2285 = vweird.f32 %v2279
    %vm2286 = vweird.f32 %v2280
    %vm2287 = vmor %vm2285, %vm2286
    %v2288 = vsel %vm2287, %v2280, %v2284
    %v2289 = vand.u32 2147483647, %v2279
    %vm2290 = vcmp.eq.f32.partialorder %v2289, 8.507059e+37
    %v2291 = vand.u32 %v2279, 2147483648
    %v2292 = vor.u32 1.1754944e-38, %v2291
    %v2293 = vsel %vm2290, %v2292, %v2288
    %v2294 = vmul.f32 %v2269, %v2293
    %v2295 = vmin.f32 %v2294, 1.0
    %v2296 = vmax.f32 %v2295, -1.0
    %v2297 = vmul.f32 %v205, %v205
    %v2298 = vmin.f32 16.0, %v2297
    %v2299 = vmul.f32 %v2298, 2.1237322e-06
    %v2300 = vadd.f32 %v2299, 0.00028619796
    %v2301 = vmul.f32 %v2298, %v2300
    %v2302 = vadd.f32 %v2301, 0.0036580483
    %v2303 = vmul.f32 %v2298, %v2302
    %v2304 = vadd.f32 %v2303, 0.05243302
    %v2305 = vmul.f32 %v2298, %v2304
    %v2306 = vadd.f32 %v2305, 0.18741608
    %v2307 = vmul.f32 %v2298, %v2306
    %v2308 = vadd.f32 %v2307, 1.1283791
    %v2309 = vmul.f32 %v205, %v2308
    %v2310 = vmul.f32 %v2298, 3.8918573e-05
    %v2311 = vadd.f32 %v2310, 0.001143296
    %v2312 = vmul.f32 %v2298, %v2311
    %v2313 = vadd.f32 %v2312, 0.014752088
    %v2314 = vmul.f32 %v2298, %v2313
    %v2315 = vadd.f32 %v2314, 0.112945676
    %v2316 = vmul.f32 %v2298, %v2315
    %v2317 = vadd.f32 %v2316, 0.4994258
    %v2318 = vmul.f32 %v2298, %v2317
    %v2319 = vadd.f32 %v2318, 1.0
    %v2320 = vrcp.pop %v2319
    %v2321 = vmul.f32 %v2319, %v2320
    %v2322 = vsub.f32 1.0, %v2321
    %v2323 = vmul.f32 %v2320, %v2322
    %v2324 = vadd.f32 %v2320, %v2323
    %vm2325 = vweird.f32 %v2319
    %vm2326 = vweird.f32 %v2320
    %vm2327 = vmor %vm2325, %vm2326
    %v2328 = vsel %vm2327, %v2320, %v2324
    %v2329 = vand.u32 2147483647, %v2319
    %vm2330 = vcmp.eq.f32.partialorder %v2329, 8.507059e+37
    %v2331 = vand.u32 %v2319, 2147483648
    %v2332 = vor.u32 1.1754944e-38, %v2331
    %v2333 = vsel %vm2330, %v2332, %v2328
    %v2334 = vmul.f32 %v2309, %v2333
    %v2335 = vmin.f32 %v2334, 1.0
    %v2336 = vmax.f32 %v2335, -1.0
    %v2337 = vmul.f32 %v206, %v206
    %v2338 = vmin.f32 16.0, %v2337
    %v2339 = vmul.f32 %v2338, 2.1237322e-06
    %v2340 = vadd.f32 %v2339, 0.00028619796
    %v2341 = vmul.f32 %v2338, %v2340
    %v2342 = vadd.f32 %v2341, 0.0036580483
    %v2343 = vmul.f32 %v2338, %v2342
    %v2344 = vadd.f32 %v2343, 0.05243302
    %v2345 = vmul.f32 %v2338, %v2344
    %v2346 = vadd.f32 %v2345, 0.18741608
    %v2347 = vmul.f32 %v2338, %v2346
    %v2348 = vadd.f32 %v2347, 1.1283791
    %v2349 = vmul.f32 %v206, %v2348
    %v2350 = vmul.f32 %v2338, 3.8918573e-05
    %v2351 = vadd.f32 %v2350, 0.001143296
    %v2352 = vmul.f32 %v2338, %v2351
    %v2353 = vadd.f32 %v2352, 0.014752088
    %v2354 = vmul.f32 %v2338, %v2353
    %v2355 = vadd.f32 %v2354, 0.112945676
    %v2356 = vmul.f32 %v2338, %v2355
    %v2357 = vadd.f32 %v2356, 0.4994258
    %v2358 = vmul.f32 %v2338, %v2357
    %v2359 = vadd.f32 %v2358, 1.0
    %v2360 = vrcp.pop %v2359
    %v2361 = vmul.f32 %v2359, %v2360
    %v2362 = vsub.f32 1.0, %v2361
    %v2363 = vmul.f32 %v2360, %v2362
    %v2364 = vadd.f32 %v2360, %v2363
    %vm2365 = vweird.f32 %v2359
    %vm2366 = vweird.f32 %v2360
    %vm2367 = vmor %vm2365, %vm2366
    %v2368 = vsel %vm2367, %v2360, %v2364
    %v2369 = vand.u32 2147483647, %v2359
    %vm2370 = vcmp.eq.f32.partialorder %v2369, 8.507059e+37
    %v2371 = vand.u32 %v2359, 2147483648
    %v2372 = vor.u32 1.1754944e-38, %v2371
    %v2373 = vsel %vm2370, %v2372, %v2368
    %v2374 = vmul.f32 %v2349, %v2373
    %v2375 = vmin.f32 %v2374, 1.0
    %v2376 = vmax.f32 %v2375, -1.0
    %v2377 = vmul.f32 %v207, %v207
    %v2378 = vmin.f32 16.0, %v2377
    %v2379 = vmul.f32 %v2378, 2.1237322e-06
    %v2380 = vadd.f32 %v2379, 0.00028619796
    %v2381 = vmul.f32 %v2378, %v2380
    %v2382 = vadd.f32 %v2381, 0.0036580483
    %v2383 = vmul.f32 %v2378, %v2382
    %v2384 = vadd.f32 %v2383, 0.05243302
    %v2385 = vmul.f32 %v2378, %v2384
    %v2386 = vadd.f32 %v2385, 0.18741608
    %v2387 = vmul.f32 %v2378, %v2386
    %v2388 = vadd.f32 %v2387, 1.1283791
    %v2389 = vmul.f32 %v207, %v2388
    %v2390 = vmul.f32 %v2378, 3.8918573e-05
    %v2391 = vadd.f32 %v2390, 0.001143296
    %v2392 = vmul.f32 %v2378, %v2391
    %v2393 = vadd.f32 %v2392, 0.014752088
    %v2394 = vmul.f32 %v2378, %v2393
    %v2395 = vadd.f32 %v2394, 0.112945676
    %v2396 = vmul.f32 %v2378, %v2395
    %v2397 = vadd.f32 %v2396, 0.4994258
    %v2398 = vmul.f32 %v2378, %v2397
    %v2399 = vadd.f32 %v2398, 1.0
    %v2400 = vrcp.pop %v2399
    %v2401 = vmul.f32 %v2399, %v2400
    %v2402 = vsub.f32 1.0, %v2401
    %v2403 = vmul.f32 %v2400, %v2402
    %v2404 = vadd.f32 %v2400, %v2403
    %vm2405 = vweird.f32 %v2399
    %vm2406 = vweird.f32 %v2400
    %vm2407 = vmor %vm2405, %vm2406
    %v2408 = vsel %vm2407, %v2400, %v2404
    %v2409 = vand.u32 2147483647, %v2399
    %vm2410 = vcmp.eq.f32.partialorder %v2409, 8.507059e+37
    %v2411 = vand.u32 %v2399, 2147483648
    %v2412 = vor.u32 1.1754944e-38, %v2411
    %v2413 = vsel %vm2410, %v2412, %v2408
    %v2414 = vmul.f32 %v2389, %v2413
    %v2415 = vmin.f32 %v2414, 1.0
    %v2416 = vmax.f32 %v2415, -1.0
    %v2417 = vmul.f32 %v208, %v208
    %v2418 = vmin.f32 16.0, %v2417
    %v2419 = vmul.f32 %v2418, 2.1237322e-06
    %v2420 = vadd.f32 %v2419, 0.00028619796
    %v2421 = vmul.f32 %v2418, %v2420
    %v2422 = vadd.f32 %v2421, 0.0036580483
    %v2423 = vmul.f32 %v2418, %v2422
    %v2424 = vadd.f32 %v2423, 0.05243302
    %v2425 = vmul.f32 %v2418, %v2424
    %v2426 = vadd.f32 %v2425, 0.18741608
    %v2427 = vmul.f32 %v2418, %v2426
    %v2428 = vadd.f32 %v2427, 1.1283791
    %v2429 = vmul.f32 %v208, %v2428
    %v2430 = vmul.f32 %v2418, 3.8918573e-05
    %v2431 = vadd.f32 %v2430, 0.001143296
    %v2432 = vmul.f32 %v2418, %v2431
    %v2433 = vadd.f32 %v2432, 0.014752088
    %v2434 = vmul.f32 %v2418, %v2433
    %v2435 = vadd.f32 %v2434, 0.112945676
    %v2436 = vmul.f32 %v2418, %v2435
    %v2437 = vadd.f32 %v2436, 0.4994258
    %v2438 = vmul.f32 %v2418, %v2437
    %v2439 = vadd.f32 %v2438, 1.0
    %v2440 = vrcp.pop %v2439
    %v2441 = vmul.f32 %v2439, %v2440
    %v2442 = vsub.f32 1.0, %v2441
    %v2443 = vmul.f32 %v2440, %v2442
    %v2444 = vadd.f32 %v2440, %v2443
    %vm2445 = vweird.f32 %v2439
    %vm2446 = vweird.f32 %v2440
    %vm2447 = vmor %vm2445, %vm2446
    %v2448 = vsel %vm2447, %v2440, %v2444
    %v2449 = vand.u32 2147483647, %v2439
    %vm2450 = vcmp.eq.f32.partialorder %v2449, 8.507059e+37
    %v2451 = vand.u32 %v2439, 2147483648
    %v2452 = vor.u32 1.1754944e-38, %v2451
    %v2453 = vsel %vm2450, %v2452, %v2448
    %v2454 = vmul.f32 %v2429, %v2453
    %v2455 = vmin.f32 %v2454, 1.0
    %v2456 = vmax.f32 %v2455, -1.0
    %v2457 = vmul.f32 %v209, %v209
    %v2458 = vmin.f32 16.0, %v2457
    %v2459 = vmul.f32 %v2458, 2.1237322e-06
    %v2460 = vadd.f32 %v2459, 0.00028619796
    %v2461 = vmul.f32 %v2458, %v2460
    %v2462 = vadd.f32 %v2461, 0.0036580483
    %v2463 = vmul.f32 %v2458, %v2462
    %v2464 = vadd.f32 %v2463, 0.05243302
    %v2465 = vmul.f32 %v2458, %v2464
    %v2466 = vadd.f32 %v2465, 0.18741608
    %v2467 = vmul.f32 %v2458, %v2466
    %v2468 = vadd.f32 %v2467, 1.1283791
    %v2469 = vmul.f32 %v209, %v2468
    %v2470 = vmul.f32 %v2458, 3.8918573e-05
    %v2471 = vadd.f32 %v2470, 0.001143296
    %v2472 = vmul.f32 %v2458, %v2471
    %v2473 = vadd.f32 %v2472, 0.014752088
    %v2474 = vmul.f32 %v2458, %v2473
    %v2475 = vadd.f32 %v2474, 0.112945676
    %v2476 = vmul.f32 %v2458, %v2475
    %v2477 = vadd.f32 %v2476, 0.4994258
    %v2478 = vmul.f32 %v2458, %v2477
    %v2479 = vadd.f32 %v2478, 1.0
    %v2480 = vrcp.pop %v2479
    %v2481 = vmul.f32 %v2479, %v2480
    %v2482 = vsub.f32 1.0, %v2481
    %v2483 = vmul.f32 %v2480, %v2482
    %v2484 = vadd.f32 %v2480, %v2483
    %vm2485 = vweird.f32 %v2479
    %vm2486 = vweird.f32 %v2480
    %vm2487 = vmor %vm2485, %vm2486
    %v2488 = vsel %vm2487, %v2480, %v2484
    %v2489 = vand.u32 2147483647, %v2479
    %vm2490 = vcmp.eq.f32.partialorder %v2489, 8.507059e+37
    %v2491 = vand.u32 %v2479, 2147483648
    %v2492 = vor.u32 1.1754944e-38, %v2491
    %v2493 = vsel %vm2490, %v2492, %v2488
    %v2494 = vmul.f32 %v2469, %v2493
    %v2495 = vmin.f32 %v2494, 1.0
    %v2496 = vmax.f32 %v2495, -1.0
    %v2497 = vmul.f32 %v210, %v210
    %v2498 = vmin.f32 16.0, %v2497
    %v2499 = vmul.f32 %v2498, 2.1237322e-06
    %v2500 = vadd.f32 %v2499, 0.00028619796
    %v2501 = vmul.f32 %v2498, %v2500
    %v2502 = vadd.f32 %v2501, 0.0036580483
    %v2503 = vmul.f32 %v2498, %v2502
    %v2504 = vadd.f32 %v2503, 0.05243302
    %v2505 = vmul.f32 %v2498, %v2504
    %v2506 = vadd.f32 %v2505, 0.18741608
    %v2507 = vmul.f32 %v2498, %v2506
    %v2508 = vadd.f32 %v2507, 1.1283791
    %v2509 = vmul.f32 %v210, %v2508
    %v2510 = vmul.f32 %v2498, 3.8918573e-05
    %v2511 = vadd.f32 %v2510, 0.001143296
    %v2512 = vmul.f32 %v2498, %v2511
    %v2513 = vadd.f32 %v2512, 0.014752088
    %v2514 = vmul.f32 %v2498, %v2513
    %v2515 = vadd.f32 %v2514, 0.112945676
    %v2516 = vmul.f32 %v2498, %v2515
    %v2517 = vadd.f32 %v2516, 0.4994258
    %v2518 = vmul.f32 %v2498, %v2517
    %v2519 = vadd.f32 %v2518, 1.0
    %v2520 = vrcp.pop %v2519
    %v2521 = vmul.f32 %v2519, %v2520
    %v2522 = vsub.f32 1.0, %v2521
    %v2523 = vmul.f32 %v2520, %v2522
    %v2524 = vadd.f32 %v2520, %v2523
    %vm2525 = vweird.f32 %v2519
    %vm2526 = vweird.f32 %v2520
    %vm2527 = vmor %vm2525, %vm2526
    %v2528 = vsel %vm2527, %v2520, %v2524
    %v2529 = vand.u32 2147483647, %v2519
    %vm2530 = vcmp.eq.f32.partialorder %v2529, 8.507059e+37
    %v2531 = vand.u32 %v2519, 2147483648
    %v2532 = vor.u32 1.1754944e-38, %v2531
    %v2533 = vsel %vm2530, %v2532, %v2528
    %v2534 = vmul.f32 %v2509, %v2533
    %v2535 = vmin.f32 %v2534, 1.0
    %v2536 = vmax.f32 %v2535, -1.0
    %v2537 = vmul.f32 %v211, %v211
    %v2538 = vmin.f32 16.0, %v2537
    %v2539 = vmul.f32 %v2538, 2.1237322e-06
    %v2540 = vadd.f32 %v2539, 0.00028619796
    %v2541 = vmul.f32 %v2538, %v2540
    %v2542 = vadd.f32 %v2541, 0.0036580483
    %v2543 = vmul.f32 %v2538, %v2542
    %v2544 = vadd.f32 %v2543, 0.05243302
    %v2545 = vmul.f32 %v2538, %v2544
    %v2546 = vadd.f32 %v2545, 0.18741608
    %v2547 = vmul.f32 %v2538, %v2546
    %v2548 = vadd.f32 %v2547, 1.1283791
    %v2549 = vmul.f32 %v211, %v2548
    %v2550 = vmul.f32 %v2538, 3.8918573e-05
    %v2551 = vadd.f32 %v2550, 0.001143296
    %v2552 = vmul.f32 %v2538, %v2551
    %v2553 = vadd.f32 %v2552, 0.014752088
    %v2554 = vmul.f32 %v2538, %v2553
    %v2555 = vadd.f32 %v2554, 0.112945676
    %v2556 = vmul.f32 %v2538, %v2555
    %v2557 = vadd.f32 %v2556, 0.4994258
    %v2558 = vmul.f32 %v2538, %v2557
    %v2559 = vadd.f32 %v2558, 1.0
    %v2560 = vrcp.pop %v2559
    %v2561 = vmul.f32 %v2559, %v2560
    %v2562 = vsub.f32 1.0, %v2561
    %v2563 = vmul.f32 %v2560, %v2562
    %v2564 = vadd.f32 %v2560, %v2563
    %vm2565 = vweird.f32 %v2559
    %vm2566 = vweird.f32 %v2560
    %vm2567 = vmor %vm2565, %vm2566
    %v2568 = vsel %vm2567, %v2560, %v2564
    %v2569 = vand.u32 2147483647, %v2559
    %vm2570 = vcmp.eq.f32.partialorder %v2569, 8.507059e+37
    %v2571 = vand.u32 %v2559, 2147483648
    %v2572 = vor.u32 1.1754944e-38, %v2571
    %v2573 = vsel %vm2570, %v2572, %v2568
    %v2574 = vmul.f32 %v2549, %v2573
    %v2575 = vmin.f32 %v2574, 1.0
    %v2576 = vmax.f32 %v2575, -1.0
    %v2577 = vmul.f32 %v212, %v212
    %v2578 = vmin.f32 16.0, %v2577
    %v2579 = vmul.f32 %v2578, 2.1237322e-06
    %v2580 = vadd.f32 %v2579, 0.00028619796
    %v2581 = vmul.f32 %v2578, %v2580
    %v2582 = vadd.f32 %v2581, 0.0036580483
    %v2583 = vmul.f32 %v2578, %v2582
    %v2584 = vadd.f32 %v2583, 0.05243302
    %v2585 = vmul.f32 %v2578, %v2584
    %v2586 = vadd.f32 %v2585, 0.18741608
    %v2587 = vmul.f32 %v2578, %v2586
    %v2588 = vadd.f32 %v2587, 1.1283791
    %v2589 = vmul.f32 %v212, %v2588
    %v2590 = vmul.f32 %v2578, 3.8918573e-05
    %v2591 = vadd.f32 %v2590, 0.001143296
    %v2592 = vmul.f32 %v2578, %v2591
    %v2593 = vadd.f32 %v2592, 0.014752088
    %v2594 = vmul.f32 %v2578, %v2593
    %v2595 = vadd.f32 %v2594, 0.112945676
    %v2596 = vmul.f32 %v2578, %v2595
    %v2597 = vadd.f32 %v2596, 0.4994258
    %v2598 = vmul.f32 %v2578, %v2597
    %v2599 = vadd.f32 %v2598, 1.0
    %v2600 = vrcp.pop %v2599
    %v2601 = vmul.f32 %v2599, %v2600
    %v2602 = vsub.f32 1.0, %v2601
    %v2603 = vmul.f32 %v2600, %v2602
    %v2604 = vadd.f32 %v2600, %v2603
    %vm2605 = vweird.f32 %v2599
    %vm2606 = vweird.f32 %v2600
    %vm2607 = vmor %vm2605, %vm2606
    %v2608 = vsel %vm2607, %v2600, %v2604
    %v2609 = vand.u32 2147483647, %v2599
    %vm2610 = vcmp.eq.f32.partialorder %v2609, 8.507059e+37
    %v2611 = vand.u32 %v2599, 2147483648
    %v2612 = vor.u32 1.1754944e-38, %v2611
    %v2613 = vsel %vm2610, %v2612, %v2608
    %v2614 = vmul.f32 %v2589, %v2613
    %v2615 = vmin.f32 %v2614, 1.0
    %v2616 = vmax.f32 %v2615, -1.0
    %v2617 = vmul.f32 %v213, %v213
    %v2618 = vmin.f32 16.0, %v2617
    %v2619 = vmul.f32 %v2618, 2.1237322e-06
    %v2620 = vadd.f32 %v2619, 0.00028619796
    %v2621 = vmul.f32 %v2618, %v2620
    %v2622 = vadd.f32 %v2621, 0.0036580483
    %v2623 = vmul.f32 %v2618, %v2622
    %v2624 = vadd.f32 %v2623, 0.05243302
    %v2625 = vmul.f32 %v2618, %v2624
    %v2626 = vadd.f32 %v2625, 0.18741608
    %v2627 = vmul.f32 %v2618, %v2626
    %v2628 = vadd.f32 %v2627, 1.1283791
    %v2629 = vmul.f32 %v213, %v2628
    %v2630 = vmul.f32 %v2618, 3.8918573e-05
    %v2631 = vadd.f32 %v2630, 0.001143296
    %v2632 = vmul.f32 %v2618, %v2631
    %v2633 = vadd.f32 %v2632, 0.014752088
    %v2634 = vmul.f32 %v2618, %v2633
    %v2635 = vadd.f32 %v2634, 0.112945676
    %v2636 = vmul.f32 %v2618, %v2635
    %v2637 = vadd.f32 %v2636, 0.4994258
    %v2638 = vmul.f32 %v2618, %v2637
    %v2639 = vadd.f32 %v2638, 1.0
    %v2640 = vrcp.pop %v2639
    %v2641 = vmul.f32 %v2639, %v2640
    %v2642 = vsub.f32 1.0, %v2641
    %v2643 = vmul.f32 %v2640, %v2642
    %v2644 = vadd.f32 %v2640, %v2643
    %vm2645 = vweird.f32 %v2639
    %vm2646 = vweird.f32 %v2640
    %vm2647 = vmor %vm2645, %vm2646
    %v2648 = vsel %vm2647, %v2640, %v2644
    %v2649 = vand.u32 2147483647, %v2639
    %vm2650 = vcmp.eq.f32.partialorder %v2649, 8.507059e+37
    %v2651 = vand.u32 %v2639, 2147483648
    %v2652 = vor.u32 1.1754944e-38, %v2651
    %v2653 = vsel %vm2650, %v2652, %v2648
    %v2654 = vmul.f32 %v2629, %v2653
    %v2655 = vmin.f32 %v2654, 1.0
    %v2656 = vmax.f32 %v2655, -1.0
    %v2657 = vmul.f32 %v214, %v214
    %v2658 = vmin.f32 16.0, %v2657
    %v2659 = vmul.f32 %v2658, 2.1237322e-06
    %v2660 = vadd.f32 %v2659, 0.00028619796
    %v2661 = vmul.f32 %v2658, %v2660
    %v2662 = vadd.f32 %v2661, 0.0036580483
    %v2663 = vmul.f32 %v2658, %v2662
    %v2664 = vadd.f32 %v2663, 0.05243302
    %v2665 = vmul.f32 %v2658, %v2664
    %v2666 = vadd.f32 %v2665, 0.18741608
    %v2667 = vmul.f32 %v2658, %v2666
    %v2668 = vadd.f32 %v2667, 1.1283791
    %v2669 = vmul.f32 %v214, %v2668
    %v2670 = vmul.f32 %v2658, 3.8918573e-05
    %v2671 = vadd.f32 %v2670, 0.001143296
    %v2672 = vmul.f32 %v2658, %v2671
    %v2673 = vadd.f32 %v2672, 0.014752088
    %v2674 = vmul.f32 %v2658, %v2673
    %v2675 = vadd.f32 %v2674, 0.112945676
    %v2676 = vmul.f32 %v2658, %v2675
    %v2677 = vadd.f32 %v2676, 0.4994258
    %v2678 = vmul.f32 %v2658, %v2677
    %v2679 = vadd.f32 %v2678, 1.0
    %v2680 = vrcp.pop %v2679
    %v2681 = vmul.f32 %v2679, %v2680
    %v2682 = vsub.f32 1.0, %v2681
    %v2683 = vmul.f32 %v2680, %v2682
    %v2684 = vadd.f32 %v2680, %v2683
    %vm2685 = vweird.f32 %v2679
    %vm2686 = vweird.f32 %v2680
    %vm2687 = vmor %vm2685, %vm2686
    %v2688 = vsel %vm2687, %v2680, %v2684
    %v2689 = vand.u32 2147483647, %v2679
    %vm2690 = vcmp.eq.f32.partialorder %v2689, 8.507059e+37
    %v2691 = vand.u32 %v2679, 2147483648
    %v2692 = vor.u32 1.1754944e-38, %v2691
    %v2693 = vsel %vm2690, %v2692, %v2688
    %v2694 = vmul.f32 %v2669, %v2693
    %v2695 = vmin.f32 %v2694, 1.0
    %v2696 = vmax.f32 %v2695, -1.0
    %v2697 = vmul.f32 %v215, %v215
    %v2698 = vmin.f32 16.0, %v2697
    %v2699 = vmul.f32 %v2698, 2.1237322e-06
    %v2700 = vadd.f32 %v2699, 0.00028619796
    %v2701 = vmul.f32 %v2698, %v2700
    %v2702 = vadd.f32 %v2701, 0.0036580483
    %v2703 = vmul.f32 %v2698, %v2702
    %v2704 = vadd.f32 %v2703, 0.05243302
    %v2705 = vmul.f32 %v2698, %v2704
    %v2706 = vadd.f32 %v2705, 0.18741608
    %v2707 = vmul.f32 %v2698, %v2706
    %v2708 = vadd.f32 %v2707, 1.1283791
    %v2709 = vmul.f32 %v215, %v2708
    %v2710 = vmul.f32 %v2698, 3.8918573e-05
    %v2711 = vadd.f32 %v2710, 0.001143296
    %v2712 = vmul.f32 %v2698, %v2711
    %v2713 = vadd.f32 %v2712, 0.014752088
    %v2714 = vmul.f32 %v2698, %v2713
    %v2715 = vadd.f32 %v2714, 0.112945676
    %v2716 = vmul.f32 %v2698, %v2715
    %v2717 = vadd.f32 %v2716, 0.4994258
    %v2718 = vmul.f32 %v2698, %v2717
    %v2719 = vadd.f32 %v2718, 1.0
    %v2720 = vrcp.pop %v2719
    %v2721 = vmul.f32 %v2719, %v2720
    %v2722 = vsub.f32 1.0, %v2721
    %v2723 = vmul.f32 %v2720, %v2722
    %v2724 = vadd.f32 %v2720, %v2723
    %vm2725 = vweird.f32 %v2719
    %vm2726 = vweird.f32 %v2720
    %vm2727 = vmor %vm2725, %vm2726
    %v2728 = vsel %vm2727, %v2720, %v2724
    %v2729 = vand.u32 2147483647, %v2719
    %vm2730 = vcmp.eq.f32.partialorder %v2729, 8.507059e+37
    %v2731 = vand.u32 %v2719, 2147483648
    %v2732 = vor.u32 1.1754944e-38, %v2731
    %v2733 = vsel %vm2730, %v2732, %v2728
    %v2734 = vmul.f32 %v2709, %v2733
    %v2735 = vmin.f32 %v2734, 1.0
    %v2736 = vmax.f32 %v2735, -1.0
    %v2737 = vmul.f32 %v216, %v216
    %v2738 = vmin.f32 16.0, %v2737
    %v2739 = vmul.f32 %v2738, 2.1237322e-06
    %v2740 = vadd.f32 %v2739, 0.00028619796
    %v2741 = vmul.f32 %v2738, %v2740
    %v2742 = vadd.f32 %v2741, 0.0036580483
    %v2743 = vmul.f32 %v2738, %v2742
    %v2744 = vadd.f32 %v2743, 0.05243302
    %v2745 = vmul.f32 %v2738, %v2744
    %v2746 = vadd.f32 %v2745, 0.18741608
    %v2747 = vmul.f32 %v2738, %v2746
    %v2748 = vadd.f32 %v2747, 1.1283791
    %v2749 = vmul.f32 %v216, %v2748
    %v2750 = vmul.f32 %v2738, 3.8918573e-05
    %v2751 = vadd.f32 %v2750, 0.001143296
    %v2752 = vmul.f32 %v2738, %v2751
    %v2753 = vadd.f32 %v2752, 0.014752088
    %v2754 = vmul.f32 %v2738, %v2753
    %v2755 = vadd.f32 %v2754, 0.112945676
    %v2756 = vmul.f32 %v2738, %v2755
    %v2757 = vadd.f32 %v2756, 0.4994258
    %v2758 = vmul.f32 %v2738, %v2757
    %v2759 = vadd.f32 %v2758, 1.0
    %v2760 = vrcp.pop %v2759
    %v2761 = vmul.f32 %v2759, %v2760
    %v2762 = vsub.f32 1.0, %v2761
    %v2763 = vmul.f32 %v2760, %v2762
    %v2764 = vadd.f32 %v2760, %v2763
    %vm2765 = vweird.f32 %v2759
    %vm2766 = vweird.f32 %v2760
    %vm2767 = vmor %vm2765, %vm2766
    %v2768 = vsel %vm2767, %v2760, %v2764
    %v2769 = vand.u32 2147483647, %v2759
    %vm2770 = vcmp.eq.f32.partialorder %v2769, 8.507059e+37
    %v2771 = vand.u32 %v2759, 2147483648
    %v2772 = vor.u32 1.1754944e-38, %v2771
    %v2773 = vsel %vm2770, %v2772, %v2768
    %v2774 = vmul.f32 %v2749, %v2773
    %v2775 = vmin.f32 %v2774, 1.0
    %v2776 = vmax.f32 %v2775, -1.0
    %v2777 = vadd.f32 %v256, 1.0
    %v2778 = vadd.f32 %v296, 1.0
    %v2779 = vadd.f32 %v336, 1.0
    %v2780 = vadd.f32 %v376, 1.0
    %v2781 = vadd.f32 %v416, 1.0
    %v2782 = vadd.f32 %v456, 1.0
    %v2783 = vadd.f32 %v496, 1.0
    %v2784 = vadd.f32 %v536, 1.0
    %v2785 = vadd.f32 %v576, 1.0
    %v2786 = vadd.f32 %v616, 1.0
    %v2787 = vadd.f32 %v656, 1.0
    %v2788 = vadd.f32 %v696, 1.0
    %v2789 = vadd.f32 %v736, 1.0
    %v2790 = vadd.f32 %v776, 1.0
    %v2791 = vadd.f32 %v816, 1.0
    %v2792 = vadd.f32 %v856, 1.0
    %v2793 = vadd.f32 %v896, 1.0
    %v2794 = vadd.f32 %v936, 1.0
    %v2795 = vadd.f32 %v976, 1.0
    %v2796 = vadd.f32 %v1016, 1.0
    %v2797 = vadd.f32 %v1056, 1.0
    %v2798 = vadd.f32 %v1096, 1.0
    %v2799 = vadd.f32 %v1136, 1.0
    %v2800 = vadd.f32 %v1176, 1.0
    %v2801 = vadd.f32 %v1216, 1.0
    %v2802 = vadd.f32 %v1256, 1.0
    %v2803 = vadd.f32 %v1296, 1.0
    %v2804 = vadd.f32 %v1336, 1.0
    %v2805 = vadd.f32 %v1376, 1.0
    %v2806 = vadd.f32 %v1416, 1.0
    %v2807 = vadd.f32 %v1456, 1.0
    %v2808 = vadd.f32 %v1496, 1.0
    %v2809 = vadd.f32 %v1536, 1.0
    %v2810 = vadd.f32 %v1576, 1.0
    %v2811 = vadd.f32 %v1616, 1.0
    %v2812 = vadd.f32 %v1656, 1.0
    %v2813 = vadd.f32 %v1696, 1.0
    %v2814 = vadd.f32 %v1736, 1.0
    %v2815 = vadd.f32 %v1776, 1.0
    %v2816 = vadd.f32 %v1816, 1.0
    %v2817 = vadd.f32 %v1856, 1.0
    %v2818 = vadd.f32 %v1896, 1.0
    %v2819 = vadd.f32 %v1936, 1.0
    %v2820 = vadd.f32 %v1976, 1.0
    %v2821 = vadd.f32 %v2016, 1.0
    %v2822 = vadd.f32 %v2056, 1.0
    %v2823 = vadd.f32 %v2096, 1.0
    %v2824 = vadd.f32 %v2136, 1.0
    %v2825 = vadd.f32 %v2176, 1.0
    %v2826 = vadd.f32 %v2216, 1.0
    %v2827 = vadd.f32 %v2256, 1.0
    %v2828 = vadd.f32 %v2296, 1.0
    %v2829 = vadd.f32 %v2336, 1.0
    %v2830 = vadd.f32 %v2376, 1.0
    %v2831 = vadd.f32 %v2416, 1.0
    %v2832 = vadd.f32 %v2456, 1.0
    %v2833 = vadd.f32 %v2496, 1.0
    %v2834 = vadd.f32 %v2536, 1.0
    %v2835 = vadd.f32 %v2576, 1.0
    %v2836 = vadd.f32 %v2616, 1.0
    %v2837 = vadd.f32 %v2656, 1.0
    %v2838 = vadd.f32 %v2696, 1.0
    %v2839 = vadd.f32 %v2736, 1.0
    %v2840 = vadd.f32 %v2776, 1.0
    %v2841 = vmul.f32 %v89, %v2777
    %v2842 = vmul.f32 %v90, %v2778
    %v2843 = vmul.f32 %v91, %v2779
    %v2844 = vmul.f32 %v92, %v2780
    %v2845 = vmul.f32 %v93, %v2781
    %v2846 = vmul.f32 %v94, %v2782
    %v2847 = vmul.f32 %v95, %v2783
    %v2848 = vmul.f32 %v96, %v2784
    %v2849 = vmul.f32 %v97, %v2785
    %v2850 = vmul.f32 %v98, %v2786
    %v2851 = vmul.f32 %v99, %v2787
    %v2852 = vmul.f32 %v100, %v2788
    %v2853 = vmul.f32 %v101, %v2789
    %v2854 = vmul.f32 %v102, %v2790
    %v2855 = vmul.f32 %v103, %v2791
    %v2856 = vmul.f32 %v104, %v2792
    %v2857 = vmul.f32 %v105, %v2793
    %v2858 = vmul.f32 %v106, %v2794
    %v2859 = vmul.f32 %v107, %v2795
    %v2860 = vmul.f32 %v108, %v2796
    %v2861 = vmul.f32 %v109, %v2797
    %v2862 = vmul.f32 %v110, %v2798
    %v2863 = vmul.f32 %v111, %v2799
    %v2864 = vmul.f32 %v112, %v2800
    %v2865 = vmul.f32 %v113, %v2801
    %v2866 = vmul.f32 %v114, %v2802
    %v2867 = vmul.f32 %v115, %v2803
    %v2868 = vmul.f32 %v116, %v2804
    %v2869 = vmul.f32 %v117, %v2805
    %v2870 = vmul.f32 %v118, %v2806
    %v2871 = vmul.f32 %v119, %v2807
    %v2872 = vmul.f32 %v120, %v2808
    %v2873 = vmul.f32 %v121, %v2809
    %v2874 = vmul.f32 %v122, %v2810
    %v2875 = vmul.f32 %v123, %v2811
    %v2876 = vmul.f32 %v124, %v2812
    %v2877 = vmul.f32 %v125, %v2813
    %v2878 = vmul.f32 %v126, %v2814
    %v2879 = vmul.f32 %v127, %v2815
    %v2880 = vmul.f32 %v128, %v2816
    %v2881 = vmul.f32 %v129, %v2817
    %v2882 = vmul.f32 %v130, %v2818
    %v2883 = vmul.f32 %v131, %v2819
    %v2884 = vmul.f32 %v132, %v2820
    %v2885 = vmul.f32 %v133, %v2821
    %v2886 = vmul.f32 %v134, %v2822
    %v2887 = vmul.f32 %v135, %v2823
    %v2888 = vmul.f32 %v136, %v2824
    %v2889 = vmul.f32 %v137, %v2825
    %v2890 = vmul.f32 %v138, %v2826
    %v2891 = vmul.f32 %v139, %v2827
    %v2892 = vmul.f32 %v140, %v2828
    %v2893 = vmul.f32 %v141, %v2829
    %v2894 = vmul.f32 %v142, %v2830
    %v2895 = vmul.f32 %v143, %v2831
    %v2896 = vmul.f32 %v144, %v2832
    %v2897 = vmul.f32 %v145, %v2833
    %v2898 = vmul.f32 %v146, %v2834
    %v2899 = vmul.f32 %v147, %v2835
    %v2900 = vmul.f32 %v148, %v2836
    %v2901 = vmul.f32 %v149, %v2837
    %v2902 = vmul.f32 %v150, %v2838
    %v2903 = vmul.f32 %v151, %v2839
    %v2904 = vmul.f32 %v152, %v2840
    %2905 = vst [vmem:[#allocation5] sm:$0xff] %v2841
    %2906 = vst [vmem:[#allocation5 + $0x8] sm:$0xff] %v2842
    %2907 = vst [vmem:[#allocation5 + $0x10] sm:$0xff] %v2843
    %2908 = vst [vmem:[#allocation5 + $0x18] sm:$0xff] %v2844
    %2909 = vst [vmem:[#allocation5 + $0x20] sm:$0xff] %v2845
    %2910 = vst [vmem:[#allocation5 + $0x28] sm:$0xff] %v2846
    %2911 = vst [vmem:[#allocation5 + $0x30] sm:$0xff] %v2847
    %2912 = vst [vmem:[#allocation5 + $0x38] sm:$0xff] %v2848
    %2913 = vst [vmem:[#allocation5 + $0x40] sm:$0xff] %v2849
    %2914 = vst [vmem:[#allocation5 + $0x48] sm:$0xff] %v2850
    %2915 = vst [vmem:[#allocation5 + $0x50] sm:$0xff] %v2851
    %2916 = vst [vmem:[#allocation5 + $0x58] sm:$0xff] %v2852
    %2917 = vst [vmem:[#allocation5 + $0x60] sm:$0xff] %v2853
    %2918 = vst [vmem:[#allocation5 + $0x68] sm:$0xff] %v2854
    %2919 = vst [vmem:[#allocation5 + $0x70] sm:$0xff] %v2855
    %2920 = vst [vmem:[#allocation5 + $0x78] sm:$0xff] %v2856
    %2921 = vst [vmem:[#allocation5 + $0x80] sm:$0xff] %v2857
    %2922 = vst [vmem:[#allocation5 + $0x88] sm:$0xff] %v2858
    %2923 = vst [vmem:[#allocation5 + $0x90] sm:$0xff] %v2859
    %2924 = vst [vmem:[#allocation5 + $0x98] sm:$0xff] %v2860
    %2925 = vst [vmem:[#allocation5 + $0xa0] sm:$0xff] %v2861
    %2926 = vst [vmem:[#allocation5 + $0xa8] sm:$0xff] %v2862
    %2927 = vst [vmem:[#allocation5 + $0xb0] sm:$0xff] %v2863
    %2928 = vst [vmem:[#allocation5 + $0xb8] sm:$0xff] %v2864
    %2929 = vst [vmem:[#allocation5 + $0xc0] sm:$0xff] %v2865
    %2930 = vst [vmem:[#allocation5 + $0xc8] sm:$0xff] %v2866
    %2931 = vst [vmem:[#allocation5 + $0xd0] sm:$0xff] %v2867
    %2932 = vst [vmem:[#allocation5 + $0xd8] sm:$0xff] %v2868
    %2933 = vst [vmem:[#allocation5 + $0xe0] sm:$0xff] %v2869
    %2934 = vst [vmem:[#allocation5 + $0xe8] sm:$0xff] %v2870
    %2935 = vst [vmem:[#allocation5 + $0xf0] sm:$0xff] %v2871
    %2936 = vst [vmem:[#allocation5 + $0xf8] sm:$0xff] %v2872
    %2937 = vst [vmem:[#allocation5 + $0x100] sm:$0xff] %v2873
    %2938 = vst [vmem:[#allocation5 + $0x108] sm:$0xff] %v2874
    %2939 = vst [vmem:[#allocation5 + $0x110] sm:$0xff] %v2875
    %2940 = vst [vmem:[#allocation5 + $0x118] sm:$0xff] %v2876
    %2941 = vst [vmem:[#allocation5 + $0x120] sm:$0xff] %v2877
    %2942 = vst [vmem:[#allocation5 + $0x128] sm:$0xff] %v2878
    %2943 = vst [vmem:[#allocation5 + $0x130] sm:$0xff] %v2879
    %2944 = vst [vmem:[#allocation5 + $0x138] sm:$0xff] %v2880
    %2945 = vst [vmem:[#allocation5 + $0x140] sm:$0xff] %v2881
    %2946 = vst [vmem:[#allocation5 + $0x148] sm:$0xff] %v2882
    %2947 = vst [vmem:[#allocation5 + $0x150] sm:$0xff] %v2883
    %2948 = vst [vmem:[#allocation5 + $0x158] sm:$0xff] %v2884
    %2949 = vst [vmem:[#allocation5 + $0x160] sm:$0xff] %v2885
    %2950 = vst [vmem:[#allocation5 + $0x168] sm:$0xff] %v2886
    %2951 = vst [vmem:[#allocation5 + $0x170] sm:$0xff] %v2887
    %2952 = vst [vmem:[#allocation5 + $0x178] sm:$0xff] %v2888
    %2953 = vst [vmem:[#allocation5 + $0x180] sm:$0xff] %v2889
    %2954 = vst [vmem:[#allocation5 + $0x188] sm:$0xff] %v2890
    %2955 = vst [vmem:[#allocation5 + $0x190] sm:$0xff] %v2891
    %2956 = vst [vmem:[#allocation5 + $0x198] sm:$0xff] %v2892
    %2957 = vst [vmem:[#allocation5 + $0x1a0] sm:$0xff] %v2893
    %2958 = vst [vmem:[#allocation5 + $0x1a8] sm:$0xff] %v2894
    %2959 = vst [vmem:[#allocation5 + $0x1b0] sm:$0xff] %v2895
    %2960 = vst [vmem:[#allocation5 + $0x1b8] sm:$0xff] %v2896
    %2961 = vst [vmem:[#allocation5 + $0x1c0] sm:$0xff] %v2897
    %2962 = vst [vmem:[#allocation5 + $0x1c8] sm:$0xff] %v2898
    %2963 = vst [vmem:[#allocation5 + $0x1d0] sm:$0xff] %v2899
    %2964 = vst [vmem:[#allocation5 + $0x1d8] sm:$0xff] %v2900
    %2965 = vst [vmem:[#allocation5 + $0x1e0] sm:$0xff] %v2901
    %2966 = vst [vmem:[#allocation5 + $0x1e8] sm:$0xff] %v2902
    %2967 = vst [vmem:[#allocation5 + $0x1f0] sm:$0xff] %v2903
    %2968 = vst [vmem:[#allocation5 + $0x1f8] sm:$0xff] %v2904
    // Predicated region
    $region10: #{tpu_custom_call.1} parent=1 // pred_check
      _
    $region11: #{tpu_custom_call.1} parent=1 // pred_check_branch
      %2970 = sbr.rel (0) target = $region13
    $region12: #{tpu_custom_call.1} parent=1 // pred_region
      %2972 = vsyncadd [#allocation4], 2048
      %s2973 = sshll.u32 [#allocation5], 4
      %s2974 = int_to_ptr.vmem [resolvable:$true] %s2973
      %s2975 = sshll.u32 %s1, 4
      %s2976 = int_to_ptr.hbm [resolvable:$true] %s2975
      %2981 = dma.vmem_to_hbm [thread:$0]  %s2974, 6144, %s2976, [#allocation4], 2048, 2048, 128
    $region13: #{tpu_custom_call.1} parent=1 // pred_fallthru
      _
    // Predicated region
    $region14: #{tpu_custom_call.1} parent=1 // pred_check
      _
    $region15: #{tpu_custom_call.1} parent=1 // pred_check_branch
      %2983 = sbr.rel (0) target = $region17
    $region16: #{tpu_custom_call.1} parent=1 // pred_region
      %2985 = dma.done [#allocation4], 8192
    $region17: #{tpu_custom_call.1} parent=1 // pred_fallthru
      _
    %2986 = vsyncpa [#allocation3], 1
    %2987 = vsyncpa [#allocation4], 1

</llo_original>
